<compile_context>
chip_gen: v6e
topology: v6e:2x2x1
jax: 0.10.0
libtpu: 0.0.40
codegen_flags: <defaults>
</compile_context>

<pallas_src>
import numpy as np
import jax
import jax.numpy as jnp
from jax import lax
from jax.experimental import pallas as pl
from jax.experimental.pallas import tpu as pltpu

KS = (1, 3, 5, 7)


def bilinear_matrix(out_size: int, in_size: int) -> np.ndarray:
    """PyTorch bilinear (align_corners=False) 1-D interpolation matrix (out, in)."""
    A = np.zeros((out_size, in_size), dtype=np.float32)
    if in_size == 1:
        A[:, 0] = 1.0
        return A
    scale = in_size / out_size
    for i in range(out_size):
        src = max((i + 0.5) * scale - 0.5, 0.0)
        x0 = min(int(np.floor(src)), in_size - 1)
        x1 = min(x0 + 1, in_size - 1)
        frac = src - x0
        A[i, x0] += 1.0 - frac
        A[i, x1] += frac
    return A


def make_reso_kernel(nb: int, h: int, t: int, cwo: int):
    """Kernel closure over the static tiling parameters."""

    def reso_kernel(x_ref, bias_ref, ch_ref, fall_ref, out_ref):
        X = x_ref[0]                                        # (nb*h, Cin*W)  bf16
        # Stage 1: one wide lane-dense matmul, f32 accumulation, cast U once.
        U = jnp.dot(X, fall_ref[...],
                    preferred_element_type=jnp.float32)     # (nb*h, t*cwo)
        U = U.astype(jnp.bfloat16)
        bias = bias_ref[...]                                # (1, cwo) f32
        rows = []
        for b in range(nb):
            # Local f32 accumulator, initialised with the hoisted bias
            # (valid: bilinear rows sum to 1).
            acc = jnp.broadcast_to(bias, (h, cwo))
            for i in range(t):
                u = U[b * h:(b + 1) * h, i * cwo:(i + 1) * cwo]   # exact 128-lane tile
                acc = acc + jnp.dot(ch_ref[i], u,
                                    preferred_element_type=jnp.float32)
            rows.append(acc)
        # Single store of the whole output block.
        out_ref[0] = rows[0] if nb == 1 else jnp.concatenate(rows, axis=0)

    return reso_kernel


def reso_block_pallas(x, weights, biases, nb=None):
    """x: (N, Cin, H, W) NCHW.  weights[k]: (Cout, Cin, k, k), biases[k]: (Cout,)."""
    N, Cin, H, W = x.shape
    Cout = weights[KS[0]].shape[0]
    CWi, CWo = Cin * W, Cout * W
    T = sum(KS)                                             # 16 (k,dy) blocks

    # Pick NB: largest divisor of N with MXU M = NB*H <= 256, preferring a grid of
    # >= 2 steps so dimension_semantics=("parallel",) can use both v7x TensorCores.
    if nb is None:
        divs = [d for d in range(1, N + 1) if N % d == 0 and d * H <= 256]
        pref = [d for d in divs if N // d >= 2]
        nb = max(pref) if pref else max(divs)
    assert N % nb == 0
    G = N // nb

    # (N, Cin, H, W) -> (N, H, Cin*W) -> (G, nb*H, Cin*W); columns ordered (ci, w).
    x_b = jnp.transpose(x, (0, 2, 1, 3)).reshape(N, H, CWi)
    x_b = x_b.reshape(G, nb * H, CWi).astype(jnp.bfloat16)

    # --- Host-built constants ---------------------------------------------------
    bias_total = np.zeros((Cout,), np.float32)
    ch_all = np.zeros((T, H, H), np.float32)                # Ch_{k,dy}, dy folded in
    f_all = np.zeros((CWi, T * CWo), np.float32)            # [F_{k,dy}] concatenated
    idx = 0
    for k in KS:
        OH, OW = H - k + 1, W - k + 1
        A_h = bilinear_matrix(H, OH)                        # (H, OH)
        A_w = bilinear_matrix(W, OW)                        # (W, OW)
        wk = np.asarray(weights[k], np.float32)             # (Cout, Cin, k, k)
        bias_total += np.asarray(biases[k], np.float32)

        # Cw_dx[c, wo] = A_w[wo, c - dx]
        cw_list = []
        for dx in range(k):
            cw = np.zeros((W, W), np.float32)
            cw[dx:dx + OW, :] = A_w.T
            cw_list.append(cw)

        for dy in range(k):
            # Ch_dy[ho, r] = A_h[ho, r - dy]
            ch_all[idx, :, dy:dy + OH] = A_h
            # F_dy[(ci*W + c), (co*W + wo)] = sum_dx w[co,ci,dy,dx] * A_w[wo, c - dx]
            f_dy = np.zeros((CWi, CWo), np.float32)
            for dx in range(k):
                f_dy += np.kron(wk[:, :, dy, dx].T, cw_list[dx])
            f_all[:, idx * CWo:(idx + 1) * CWo] = f_dy
            idx += 1
    assert idx == T

    # Per-output-column bias: column index co*W + wo -> bias_total[co].
    bias_row = jnp.asarray(np.repeat(bias_total, W)[None, :], jnp.float32)  # (1, CWo)
    ch_all_j = jnp.asarray(ch_all, jnp.bfloat16)
    f_all_j = jnp.asarray(f_all, jnp.bfloat16)

    # VMEM budget: double-buffered x/out blocks + resident constants + U temporaries.
    blk = nb * H
    vmem_est = (2 * (blk * CWi * 2 + blk * CWo * 4)         # x (bf16), out (f32) blocks
                + CWo * 4 + T * H * H * 2 + CWi * T * CWo * 2   # bias, Ch_all, F_all
                + 6 * blk * T * CWo * 4)                     # U (f32 + bf16) + headroom
    vmem_limit = int(min(max(2 * vmem_est, 4 << 20), 96 << 20))

    kernel = make_reso_kernel(nb, H, T, CWo)

    out = pl.pallas_call(
        kernel,
        out_shape=jax.ShapeDtypeStruct((G, nb * H, CWo), jnp.float32),
        grid_spec=pltpu.PrefetchScalarGridSpec(
            num_scalar_prefetch=0,
            grid=(G,),
            in_specs=[
                pl.BlockSpec((1, nb * H, CWi), lambda n: (n, 0, 0)),   # x, per step
                pl.BlockSpec((1, CWo), lambda n: (0, 0)),              # bias (invariant)
                pl.BlockSpec((T, H, H), lambda n: (0, 0, 0)),          # Ch_all (invariant)
                pl.BlockSpec((CWi, T * CWo), lambda n: (0, 0)),        # F_all (invariant)
            ],
            out_specs=pl.BlockSpec((1, nb * H, CWo), lambda n: (n, 0, 0)),
        ),
        compiler_params=pltpu.CompilerParams(
            dimension_semantics=("parallel",),
            vmem_limit_bytes=vmem_limit),
    )(x_b, bias_row, ch_all_j, f_all_j)

    # (G, nb*H, CWo) -> (N, H, Cout, W) -> NCHW
    return jnp.transpose(out.reshape(N, H, Cout, W), (0, 2, 1, 3))


def reso_block_reference(x, weights, biases):
    """Pure-JAX f32 reference (lax.conv + explicit bilinear matrices)."""
    N, Cin, H, W = x.shape
    out = 0.0
    for k in KS:
        OH, OW = H - k + 1, W - k + 1
        y = lax.conv_general_dilated(
            x, weights[k].astype(jnp.float32), (1, 1), 'VALID',
            dimension_numbers=('NCHW', 'OIHW', 'NCHW'))
        y = y + biases[k][None, :, None, None]
        A_h = jnp.asarray(bilinear_matrix(H, OH))
        A_w = jnp.asarray(bilinear_matrix(W, OW))
        out = out + jnp.einsum('ho,wp,ncop->nchw', A_h, A_w, y)
    return out / 1.0


if __name__ == "__main__":
    N, Cin, Cout, H, W = 2, 4, 8, 16, 16

    key = jax.random.PRNGKey(0)
    keys = jax.random.split(key, 1 + 2 * len(KS))
    x = jax.random.normal(keys[0], (N, Cin, H, W), dtype=jnp.float32)

    weights, biases = {}, {}
    for i, k in enumerate(KS):
        fan_in = Cin * k * k
        weights[k] = jax.random.normal(keys[1 + 2 * i], (Cout, Cin, k, k),
                                       dtype=jnp.float32) / np.sqrt(fan_in)
        biases[k] = jax.random.normal(keys[2 + 2 * i], (Cout,),
                                      dtype=jnp.float32) * 0.1

    out = jax.block_until_ready(reso_block_pallas(x, weights, biases))
    ref = jax.block_until_ready(reso_block_reference(x, weights, biases))

    # bf16 MXU operands with f32 accumulation -> slightly looser tolerance than pure f32.
    np.testing.assert_allclose(np.asarray(out), np.asarray(ref), rtol=5e-2, atol=5e-2)

    print("KERNEL_OK")
</pallas_src>

<mosaic_0001>
module attributes {stable_mosaic.version = 11 : i64} {
  func.func @reso_kernel(%arg0: i32, %arg1: memref<1x16x64xbf16, #tpu.memory_space<vmem>>, %arg2: memref<1x128xf32, #tpu.memory_space<vmem>>, %arg3: memref<16x16x16xbf16, #tpu.memory_space<vmem>>, %arg4: memref<64x2048xbf16, #tpu.memory_space<vmem>>, %arg5: memref<1x16x128xf32, #tpu.memory_space<vmem>>) attributes {dimension_semantics = [#tpu.dimension_semantics<parallel>], iteration_bounds = array<i64: 2>, scalar_prefetch = 0 : i64, scratch_operands = 0 : i64, tpu.core_type = #tpu.core_type<tc>, window_params = [{transform_indices = @transform_0, window_bounds = array<i64: 1, 16, 64>}, {pipeline_mode = #tpu.pipeline_mode<synchronous>, transform_indices = @transform_1, window_bounds = array<i64: 1, 128>}, {pipeline_mode = #tpu.pipeline_mode<synchronous>, transform_indices = @transform_2, window_bounds = array<i64: 16, 16, 16>}, {pipeline_mode = #tpu.pipeline_mode<synchronous>, transform_indices = @transform_3, window_bounds = array<i64: 64, 2048>}, {transform_indices = @transform_4, window_bounds = array<i64: 1, 16, 128>}]} {
    %c0 = arith.constant 0 : index
    %c0_0 = arith.constant 0 : index
    %c0_1 = arith.constant 0 : index
    %0 = vector.load %arg1[%c0, %c0_0, %c0_1] : memref<1x16x64xbf16, #tpu.memory_space<vmem>>, vector<1x16x64xbf16>
    %1 = vector.shape_cast %0 : vector<1x16x64xbf16> to vector<16x64xbf16>
    %c0_2 = arith.constant 0 : index
    %c0_3 = arith.constant 0 : index
    %2 = vector.load %arg4[%c0_2, %c0_3] : memref<64x2048xbf16, #tpu.memory_space<vmem>>, vector<64x2048xbf16>
    %cst = arith.constant dense<0.000000e+00> : vector<16x2048xf32>
    %3 = tpu.matmul %1, %2, %cst {dimension_numbers = #tpu.dot_dimension_numbers<[1], [0], [0], [1], [0, 0, 1, 1], [], []>} : vector<16x64xbf16>, vector<64x2048xbf16>, vector<16x2048xf32> -> vector<16x2048xf32>
    %4 = arith.truncf %3 : vector<16x2048xf32> to vector<16x2048xbf16>
    %c0_4 = arith.constant 0 : index
    %c0_5 = arith.constant 0 : index
    %5 = vector.load %arg2[%c0_4, %c0_5] : memref<1x128xf32, #tpu.memory_space<vmem>>, vector<1x128xf32>
    %6 = vector.shape_cast %5 : vector<1x128xf32> to vector<1x128xf32>
    %7 = vector.broadcast %6 : vector<1x128xf32> to vector<16x128xf32>
    %8 = vector.extract_strided_slice %4 {offsets = [0, 0], sizes = [16, 128], strides = [1, 1]} : vector<16x2048xbf16> to vector<16x128xbf16>
    %c0_6 = arith.constant 0 : index
    %c0_7 = arith.constant 0 : index
    %c0_8 = arith.constant 0 : index
    %9 = vector.load %arg3[%c0_6, %c0_7, %c0_8] : memref<16x16x16xbf16, #tpu.memory_space<vmem>>, vector<1x16x16xbf16>
    %10 = vector.shape_cast %9 : vector<1x16x16xbf16> to vector<16x16xbf16>
    %cst_9 = arith.constant dense<0.000000e+00> : vector<16x128xf32>
    %11 = tpu.matmul %10, %8, %cst_9 {dimension_numbers = #tpu.dot_dimension_numbers<[1], [0], [0], [1], [0, 0, 1, 1], [], []>} : vector<16x16xbf16>, vector<16x128xbf16>, vector<16x128xf32> -> vector<16x128xf32>
    %12 = arith.addf %7, %11 : vector<16x128xf32>
    %13 = vector.extract_strided_slice %4 {offsets = [0, 128], sizes = [16, 128], strides = [1, 1]} : vector<16x2048xbf16> to vector<16x128xbf16>
    %c1 = arith.constant 1 : index
    %c0_10 = arith.constant 0 : index
    %c0_11 = arith.constant 0 : index
    %14 = vector.load %arg3[%c1, %c0_10, %c0_11] : memref<16x16x16xbf16, #tpu.memory_space<vmem>>, vector<1x16x16xbf16>
    %15 = vector.shape_cast %14 : vector<1x16x16xbf16> to vector<16x16xbf16>
    %cst_12 = arith.constant dense<0.000000e+00> : vector<16x128xf32>
    %16 = tpu.matmul %15, %13, %cst_12 {dimension_numbers = #tpu.dot_dimension_numbers<[1], [0], [0], [1], [0, 0, 1, 1], [], []>} : vector<16x16xbf16>, vector<16x128xbf16>, vector<16x128xf32> -> vector<16x128xf32>
    %17 = arith.addf %12, %16 : vector<16x128xf32>
    %18 = vector.extract_strided_slice %4 {offsets = [0, 256], sizes = [16, 128], strides = [1, 1]} : vector<16x2048xbf16> to vector<16x128xbf16>
    %c2 = arith.constant 2 : index
    %c0_13 = arith.constant 0 : index
    %c0_14 = arith.constant 0 : index
    %19 = vector.load %arg3[%c2, %c0_13, %c0_14] : memref<16x16x16xbf16, #tpu.memory_space<vmem>>, vector<1x16x16xbf16>
    %20 = vector.shape_cast %19 : vector<1x16x16xbf16> to vector<16x16xbf16>
    %cst_15 = arith.constant dense<0.000000e+00> : vector<16x128xf32>
    %21 = tpu.matmul %20, %18, %cst_15 {dimension_numbers = #tpu.dot_dimension_numbers<[1], [0], [0], [1], [0, 0, 1, 1], [], []>} : vector<16x16xbf16>, vector<16x128xbf16>, vector<16x128xf32> -> vector<16x128xf32>
    %22 = arith.addf %17, %21 : vector<16x128xf32>
    %23 = vector.extract_strided_slice %4 {offsets = [0, 384], sizes = [16, 128], strides = [1, 1]} : vector<16x2048xbf16> to vector<16x128xbf16>
    %c3 = arith.constant 3 : index
    %c0_16 = arith.constant 0 : index
    %c0_17 = arith.constant 0 : index
    %24 = vector.load %arg3[%c3, %c0_16, %c0_17] : memref<16x16x16xbf16, #tpu.memory_space<vmem>>, vector<1x16x16xbf16>
    %25 = vector.shape_cast %24 : vector<1x16x16xbf16> to vector<16x16xbf16>
    %cst_18 = arith.constant dense<0.000000e+00> : vector<16x128xf32>
    %26 = tpu.matmul %25, %23, %cst_18 {dimension_numbers = #tpu.dot_dimension_numbers<[1], [0], [0], [1], [0, 0, 1, 1], [], []>} : vector<16x16xbf16>, vector<16x128xbf16>, vector<16x128xf32> -> vector<16x128xf32>
    %27 = arith.addf %22, %26 : vector<16x128xf32>
    %28 = vector.extract_strided_slice %4 {offsets = [0, 512], sizes = [16, 128], strides = [1, 1]} : vector<16x2048xbf16> to vector<16x128xbf16>
    %c4 = arith.constant 4 : index
    %c0_19 = arith.constant 0 : index
    %c0_20 = arith.constant 0 : index
    %29 = vector.load %arg3[%c4, %c0_19, %c0_20] : memref<16x16x16xbf16, #tpu.memory_space<vmem>>, vector<1x16x16xbf16>
    %30 = vector.shape_cast %29 : vector<1x16x16xbf16> to vector<16x16xbf16>
    %cst_21 = arith.constant dense<0.000000e+00> : vector<16x128xf32>
    %31 = tpu.matmul %30, %28, %cst_21 {dimension_numbers = #tpu.dot_dimension_numbers<[1], [0], [0], [1], [0, 0, 1, 1], [], []>} : vector<16x16xbf16>, vector<16x128xbf16>, vector<16x128xf32> -> vector<16x128xf32>
    %32 = arith.addf %27, %31 : vector<16x128xf32>
    %33 = vector.extract_strided_slice %4 {offsets = [0, 640], sizes = [16, 128], strides = [1, 1]} : vector<16x2048xbf16> to vector<16x128xbf16>
    %c5 = arith.constant 5 : index
    %c0_22 = arith.constant 0 : index
    %c0_23 = arith.constant 0 : index
    %34 = vector.load %arg3[%c5, %c0_22, %c0_23] : memref<16x16x16xbf16, #tpu.memory_space<vmem>>, vector<1x16x16xbf16>
    %35 = vector.shape_cast %34 : vector<1x16x16xbf16> to vector<16x16xbf16>
    %cst_24 = arith.constant dense<0.000000e+00> : vector<16x128xf32>
    %36 = tpu.matmul %35, %33, %cst_24 {dimension_numbers = #tpu.dot_dimension_numbers<[1], [0], [0], [1], [0, 0, 1, 1], [], []>} : vector<16x16xbf16>, vector<16x128xbf16>, vector<16x128xf32> -> vector<16x128xf32>
    %37 = arith.addf %32, %36 : vector<16x128xf32>
    %38 = vector.extract_strided_slice %4 {offsets = [0, 768], sizes = [16, 128], strides = [1, 1]} : vector<16x2048xbf16> to vector<16x128xbf16>
    %c6 = arith.constant 6 : index
    %c0_25 = arith.constant 0 : index
    %c0_26 = arith.constant 0 : index
    %39 = vector.load %arg3[%c6, %c0_25, %c0_26] : memref<16x16x16xbf16, #tpu.memory_space<vmem>>, vector<1x16x16xbf16>
    %40 = vector.shape_cast %39 : vector<1x16x16xbf16> to vector<16x16xbf16>
    %cst_27 = arith.constant dense<0.000000e+00> : vector<16x128xf32>
    %41 = tpu.matmul %40, %38, %cst_27 {dimension_numbers = #tpu.dot_dimension_numbers<[1], [0], [0], [1], [0, 0, 1, 1], [], []>} : vector<16x16xbf16>, vector<16x128xbf16>, vector<16x128xf32> -> vector<16x128xf32>
    %42 = arith.addf %37, %41 : vector<16x128xf32>
    %43 = vector.extract_strided_slice %4 {offsets = [0, 896], sizes = [16, 128], strides = [1, 1]} : vector<16x2048xbf16> to vector<16x128xbf16>
    %c7 = arith.constant 7 : index
    %c0_28 = arith.constant 0 : index
    %c0_29 = arith.constant 0 : index
    %44 = vector.load %arg3[%c7, %c0_28, %c0_29] : memref<16x16x16xbf16, #tpu.memory_space<vmem>>, vector<1x16x16xbf16>
    %45 = vector.shape_cast %44 : vector<1x16x16xbf16> to vector<16x16xbf16>
    %cst_30 = arith.constant dense<0.000000e+00> : vector<16x128xf32>
    %46 = tpu.matmul %45, %43, %cst_30 {dimension_numbers = #tpu.dot_dimension_numbers<[1], [0], [0], [1], [0, 0, 1, 1], [], []>} : vector<16x16xbf16>, vector<16x128xbf16>, vector<16x128xf32> -> vector<16x128xf32>
    %47 = arith.addf %42, %46 : vector<16x128xf32>
    %48 = vector.extract_strided_slice %4 {offsets = [0, 1024], sizes = [16, 128], strides = [1, 1]} : vector<16x2048xbf16> to vector<16x128xbf16>
    %c8 = arith.constant 8 : index
    %c0_31 = arith.constant 0 : index
    %c0_32 = arith.constant 0 : index
    %49 = vector.load %arg3[%c8, %c0_31, %c0_32] : memref<16x16x16xbf16, #tpu.memory_space<vmem>>, vector<1x16x16xbf16>
    %50 = vector.shape_cast %49 : vector<1x16x16xbf16> to vector<16x16xbf16>
    %cst_33 = arith.constant dense<0.000000e+00> : vector<16x128xf32>
    %51 = tpu.matmul %50, %48, %cst_33 {dimension_numbers = #tpu.dot_dimension_numbers<[1], [0], [0], [1], [0, 0, 1, 1], [], []>} : vector<16x16xbf16>, vector<16x128xbf16>, vector<16x128xf32> -> vector<16x128xf32>
    %52 = arith.addf %47, %51 : vector<16x128xf32>
    %53 = vector.extract_strided_slice %4 {offsets = [0, 1152], sizes = [16, 128], strides = [1, 1]} : vector<16x2048xbf16> to vector<16x128xbf16>
    %c9 = arith.constant 9 : index
    %c0_34 = arith.constant 0 : index
    %c0_35 = arith.constant 0 : index
    %54 = vector.load %arg3[%c9, %c0_34, %c0_35] : memref<16x16x16xbf16, #tpu.memory_space<vmem>>, vector<1x16x16xbf16>
    %55 = vector.shape_cast %54 : vector<1x16x16xbf16> to vector<16x16xbf16>
    %cst_36 = arith.constant dense<0.000000e+00> : vector<16x128xf32>
    %56 = tpu.matmul %55, %53, %cst_36 {dimension_numbers = #tpu.dot_dimension_numbers<[1], [0], [0], [1], [0, 0, 1, 1], [], []>} : vector<16x16xbf16>, vector<16x128xbf16>, vector<16x128xf32> -> vector<16x128xf32>
    %57 = arith.addf %52, %56 : vector<16x128xf32>
    %58 = vector.extract_strided_slice %4 {offsets = [0, 1280], sizes = [16, 128], strides = [1, 1]} : vector<16x2048xbf16> to vector<16x128xbf16>
    %c10 = arith.constant 10 : index
    %c0_37 = arith.constant 0 : index
    %c0_38 = arith.constant 0 : index
    %59 = vector.load %arg3[%c10, %c0_37, %c0_38] : memref<16x16x16xbf16, #tpu.memory_space<vmem>>, vector<1x16x16xbf16>
    %60 = vector.shape_cast %59 : vector<1x16x16xbf16> to vector<16x16xbf16>
    %cst_39 = arith.constant dense<0.000000e+00> : vector<16x128xf32>
    %61 = tpu.matmul %60, %58, %cst_39 {dimension_numbers = #tpu.dot_dimension_numbers<[1], [0], [0], [1], [0, 0, 1, 1], [], []>} : vector<16x16xbf16>, vector<16x128xbf16>, vector<16x128xf32> -> vector<16x128xf32>
    %62 = arith.addf %57, %61 : vector<16x128xf32>
    %63 = vector.extract_strided_slice %4 {offsets = [0, 1408], sizes = [16, 128], strides = [1, 1]} : vector<16x2048xbf16> to vector<16x128xbf16>
    %c11 = arith.constant 11 : index
    %c0_40 = arith.constant 0 : index
    %c0_41 = arith.constant 0 : index
    %64 = vector.load %arg3[%c11, %c0_40, %c0_41] : memref<16x16x16xbf16, #tpu.memory_space<vmem>>, vector<1x16x16xbf16>
    %65 = vector.shape_cast %64 : vector<1x16x16xbf16> to vector<16x16xbf16>
    %cst_42 = arith.constant dense<0.000000e+00> : vector<16x128xf32>
    %66 = tpu.matmul %65, %63, %cst_42 {dimension_numbers = #tpu.dot_dimension_numbers<[1], [0], [0], [1], [0, 0, 1, 1], [], []>} : vector<16x16xbf16>, vector<16x128xbf16>, vector<16x128xf32> -> vector<16x128xf32>
    %67 = arith.addf %62, %66 : vector<16x128xf32>
    %68 = vector.extract_strided_slice %4 {offsets = [0, 1536], sizes = [16, 128], strides = [1, 1]} : vector<16x2048xbf16> to vector<16x128xbf16>
    %c12 = arith.constant 12 : index
    %c0_43 = arith.constant 0 : index
    %c0_44 = arith.constant 0 : index
    %69 = vector.load %arg3[%c12, %c0_43, %c0_44] : memref<16x16x16xbf16, #tpu.memory_space<vmem>>, vector<1x16x16xbf16>
    %70 = vector.shape_cast %69 : vector<1x16x16xbf16> to vector<16x16xbf16>
    %cst_45 = arith.constant dense<0.000000e+00> : vector<16x128xf32>
    %71 = tpu.matmul %70, %68, %cst_45 {dimension_numbers = #tpu.dot_dimension_numbers<[1], [0], [0], [1], [0, 0, 1, 1], [], []>} : vector<16x16xbf16>, vector<16x128xbf16>, vector<16x128xf32> -> vector<16x128xf32>
    %72 = arith.addf %67, %71 : vector<16x128xf32>
    %73 = vector.extract_strided_slice %4 {offsets = [0, 1664], sizes = [16, 128], strides = [1, 1]} : vector<16x2048xbf16> to vector<16x128xbf16>
    %c13 = arith.constant 13 : index
    %c0_46 = arith.constant 0 : index
    %c0_47 = arith.constant 0 : index
    %74 = vector.load %arg3[%c13, %c0_46, %c0_47] : memref<16x16x16xbf16, #tpu.memory_space<vmem>>, vector<1x16x16xbf16>
    %75 = vector.shape_cast %74 : vector<1x16x16xbf16> to vector<16x16xbf16>
    %cst_48 = arith.constant dense<0.000000e+00> : vector<16x128xf32>
    %76 = tpu.matmul %75, %73, %cst_48 {dimension_numbers = #tpu.dot_dimension_numbers<[1], [0], [0], [1], [0, 0, 1, 1], [], []>} : vector<16x16xbf16>, vector<16x128xbf16>, vector<16x128xf32> -> vector<16x128xf32>
    %77 = arith.addf %72, %76 : vector<16x128xf32>
    %78 = vector.extract_strided_slice %4 {offsets = [0, 1792], sizes = [16, 128], strides = [1, 1]} : vector<16x2048xbf16> to vector<16x128xbf16>
    %c14 = arith.constant 14 : index
    %c0_49 = arith.constant 0 : index
    %c0_50 = arith.constant 0 : index
    %79 = vector.load %arg3[%c14, %c0_49, %c0_50] : memref<16x16x16xbf16, #tpu.memory_space<vmem>>, vector<1x16x16xbf16>
    %80 = vector.shape_cast %79 : vector<1x16x16xbf16> to vector<16x16xbf16>
    %cst_51 = arith.constant dense<0.000000e+00> : vector<16x128xf32>
    %81 = tpu.matmul %80, %78, %cst_51 {dimension_numbers = #tpu.dot_dimension_numbers<[1], [0], [0], [1], [0, 0, 1, 1], [], []>} : vector<16x16xbf16>, vector<16x128xbf16>, vector<16x128xf32> -> vector<16x128xf32>
    %82 = arith.addf %77, %81 : vector<16x128xf32>
    %83 = vector.extract_strided_slice %4 {offsets = [0, 1920], sizes = [16, 128], strides = [1, 1]} : vector<16x2048xbf16> to vector<16x128xbf16>
    %c15 = arith.constant 15 : index
    %c0_52 = arith.constant 0 : index
    %c0_53 = arith.constant 0 : index
    %84 = vector.load %arg3[%c15, %c0_52, %c0_53] : memref<16x16x16xbf16, #tpu.memory_space<vmem>>, vector<1x16x16xbf16>
    %85 = vector.shape_cast %84 : vector<1x16x16xbf16> to vector<16x16xbf16>
    %cst_54 = arith.constant dense<0.000000e+00> : vector<16x128xf32>
    %86 = tpu.matmul %85, %83, %cst_54 {dimension_numbers = #tpu.dot_dimension_numbers<[1], [0], [0], [1], [0, 0, 1, 1], [], []>} : vector<16x16xbf16>, vector<16x128xbf16>, vector<16x128xf32> -> vector<16x128xf32>
    %87 = arith.addf %82, %86 : vector<16x128xf32>
    %c0_55 = arith.constant 0 : index
    %c0_56 = arith.constant 0 : index
    %c0_57 = arith.constant 0 : index
    %88 = vector.load %arg5[%c0_55, %c0_56, %c0_57] : memref<1x16x128xf32, #tpu.memory_space<vmem>>, vector<1x16x128xf32>
    %89 = vector.shape_cast %88 : vector<1x16x128xf32> to vector<16x128xf32>
    %90 = vector.shape_cast %87 : vector<16x128xf32> to vector<1x16x128xf32>
    tpu.vector_store %arg5[%c0_55, %c0_56, %c0_57], %90 {strides = array<i32>} : memref<1x16x128xf32, #tpu.memory_space<vmem>>, vector<1x16x128xf32>,
    return
  }
  func.func @transform_0(%arg0: i32) -> (i32, i32, i32) {
    %c0_i32 = arith.constant 0 : i32
    %c0_i32_0 = arith.constant 0 : i32
    %c0_i32_1 = arith.constant 0 : i32
    return %arg0, %c0_i32, %c0_i32_0 : i32, i32, i32
  }
  func.func @transform_1(%arg0: i32) -> (i32, i32) {
    %c0_i32 = arith.constant 0 : i32
    %c0_i32_0 = arith.constant 0 : i32
    %c0_i32_1 = arith.constant 0 : i32
    return %c0_i32, %c0_i32_0 : i32, i32
  }
  func.func @transform_2(%arg0: i32) -> (i32, i32, i32) {
    %c0_i32 = arith.constant 0 : i32
    %c0_i32_0 = arith.constant 0 : i32
    %c0_i32_1 = arith.constant 0 : i32
    %c0_i32_2 = arith.constant 0 : i32
    return %c0_i32, %c0_i32_0, %c0_i32_1 : i32, i32, i32
  }
  func.func @transform_3(%arg0: i32) -> (i32, i32) {
    %c0_i32 = arith.constant 0 : i32
    %c0_i32_0 = arith.constant 0 : i32
    %c0_i32_1 = arith.constant 0 : i32
    return %c0_i32, %c0_i32_0 : i32, i32
  }
  func.func @transform_4(%arg0: i32) -> (i32, i32, i32) {
    %c0_i32 = arith.constant 0 : i32
    %c0_i32_0 = arith.constant 0 : i32
    %c0_i32_1 = arith.constant 0 : i32
    return %arg0, %c0_i32, %c0_i32_0 : i32, i32, i32
  }
}

</mosaic_0001>

<llo_original>
// kernel: tpu_custom_call.1
$region0: #{tpu_custom_call.1}
  #allocation0 [shape = 'u32[]', space=smem, size = 0x4, offset = 0x4, fixed_abs, tag = 'smem constant byte address 0x4 - core index']
  #allocation1 [shape = 'u32[144,128]{1,0:T(1,128)}', space=vmem, size = 0x12000, scoped, tag = 'internal scratch']
  %s0 = inlined_call_operand.hbm [shape: bf16[2,16,64], index: 0, kind: input, shape index: {}]
  %s1 = inlined_call_operand.vmem [shape: f32[1,128], index: 1, kind: input, shape index: {}]
  %s2 = inlined_call_operand.hbm [shape: bf16[16,16,16], index: 2, kind: input, shape index: {}]
  %s3 = inlined_call_operand.hbm [shape: bf16[64,2048], index: 3, kind: input, shape index: {}]
  %s4 = inlined_call_operand.hbm [shape: f32[2,16,128], index: 4, kind: output, shape index: {}]
  %s5 = sld [smem:[#allocation0]]
  $region61: #{tpu_custom_call.1} parent=0
    _
  %s7 = ssub.s32 1, %s5
  %s8 = scalar_select 0, %s7, %s5
  $region1: #{tpu_custom_call.1} parent=0
    #allocation2 [shape = 'u8[8192]{0}', space=vmem, size = 0x2000, scoped, tag = 'input window, operand 0']
    #allocation3 [shape = 's32[2]{0}', space=sflag, size = 0x8, scoped, tag = 'scoped memory for tpu_custom_call.1']
    #allocation4 [shape = 's32[2]{0}', space=sflag, size = 0x8, scoped, tag = 'scoped memory for tpu_custom_call.1']
    #allocation5 [shape = 'u8[65536]{0}', space=vmem, size = 0x10000, scoped, tag = 'input window, operand 2, single buffered']
    #allocation6 [shape = 's32[1]{0}', space=sflag, size = 0x4, scoped, tag = 'scoped memory for tpu_custom_call.1']
    #allocation7 [shape = 'u8[262144]{0}', space=vmem, size = 0x40000, scoped, tag = 'input window, operand 3, single buffered']
    #allocation8 [shape = 'u8[16384]{0}', space=vmem, size = 0x4000, scoped, tag = 'output window, operand 0']
    %9 = vsyncpa [#allocation3], 0
    %s10 = scalar_lea.sflag [#allocation3], 1
    %11 = vsyncpa %s10, 0
    %12 = vsyncpa [#allocation6], 0
    %13 = vsyncpa [#allocation4], 0
    %s14 = scalar_lea.sflag [#allocation4], 1
    %15 = vsyncpa %s14, 0
    loop: start=0, step=1, limit=4
    $region2: #{tpu_custom_call.1} parent=1 // loop_pre_header
      _
    $region3: #{tpu_custom_call.1} parent=1 // loop_header
      %s17 = sphi 0, %s21
      %p18 = scmp.ge.s32.totalorder %s17, 4
      %s27 = sphi 0, %s29
      %s30 = sphi 0, %s27
      %s31 = sphi 0, %s30
      %s47 = sphi 0, %s31
      %s51 = sphi 0, %s51
      %s53 = sphi 0, %s51
      %s54 = sphi 0, %s53
      %s68 = sphi 0, %s54
      %s72 = sphi 0, %s72
      %s74 = sphi 0, %s72
      %s75 = sphi 0, %s74
      %s89 = sphi 0, %s75
      %s93 = sphi 0, %s93
      %s95 = sphi 0, %s93
      %s96 = sphi 0, %s95
      %s110 = sphi 0, %s96
      %s116 = sphi 0, %s118
      %s119 = sphi 0, %s116
      %s120 = sphi 0, %s119
      %s136 = sphi 0, %s120
    $region4: #{tpu_custom_call.1} parent=1 // loop_header_branch
      %20 = sbr.rel (%p18) target = $region8
    $region5: #{tpu_custom_call.1} parent=1 // loop_body
      %s22 = ssub.s32 %s17, 1
      %s23 = ssub.s32 %s17, 2
      %s24 = sadd.s32 %s17, 1
      %s25 = ssub.s32 %s17, %s24
      %p26 = scmp.eq.s32.totalorder %s25, 0
      %s28 = sadd.s32 %s27, 1
      %s29 = scalar_select %p26, %s27, %s28
      %p32 = pneg %p26
      %p33 = scmp.eq.s32.totalorder %s17, 1
      %p34 = por %p32, %p33
      %p35 = scmp.ne.s32.totalorder %s27, %s30
      %p36 = scmp.eq.s32.totalorder %s17, 0
      %p37 = por %p35, %p36
      %p38 = scmp.ne.s32.totalorder %s27, %s30
      %p39 = scmp.eq.s32.totalorder %s22, 1
      %p40 = por %p38, %p39
      %p41 = scmp.ne.s32.totalorder %s30, %s31
      %p42 = scmp.eq.s32.totalorder %s22, 0
      %p43 = por %p41, %p42
      %p44 = scmp.ne.s32.totalorder %s30, %s31
      %p45 = scmp.eq.s32.totalorder %s23, 1
      %p46 = por %p44, %p45
      %p48 = scmp.ne.s32.totalorder %s31, %s47
      %p49 = scmp.eq.s32.totalorder %s23, 0
      %p50 = por %p48, %p49
      %s52 = sadd.s32 %s51, 1
      %p55 = scmp.eq.s32.totalorder %s17, 1
      %p56 = scmp.ne.s32.totalorder %s51, %s53
      %p57 = scmp.eq.s32.totalorder %s17, 0
      %p58 = por %p56, %p57
      %p59 = scmp.ne.s32.totalorder %s51, %s53
      %p60 = scmp.eq.s32.totalorder %s22, 1
      %p61 = por %p59, %p60
      %p62 = scmp.ne.s32.totalorder %s53, %s54
      %p63 = scmp.eq.s32.totalorder %s22, 0
      %p64 = por %p62, %p63
      %p65 = scmp.ne.s32.totalorder %s53, %s54
      %p66 = scmp.eq.s32.totalorder %s23, 1
      %p67 = por %p65, %p66
      %p69 = scmp.ne.s32.totalorder %s54, %s68
      %p70 = scmp.eq.s32.totalorder %s23, 0
      %p71 = por %p69, %p70
      %s73 = sadd.s32 %s72, 1
      %p76 = scmp.eq.s32.totalorder %s17, 1
      %p77 = scmp.ne.s32.totalorder %s72, %s74
      %p78 = scmp.eq.s32.totalorder %s17, 0
      %p79 = por %p77, %p78
      %p80 = scmp.ne.s32.totalorder %s72, %s74
      %p81 = scmp.eq.s32.totalorder %s22, 1
      %p82 = por %p80, %p81
      %p83 = scmp.ne.s32.totalorder %s74, %s75
      %p84 = scmp.eq.s32.totalorder %s22, 0
      %p85 = por %p83, %p84
      %p86 = scmp.ne.s32.totalorder %s74, %s75
      %p87 = scmp.eq.s32.totalorder %s23, 1
      %p88 = por %p86, %p87
      %p90 = scmp.ne.s32.totalorder %s75, %s89
      %p91 = scmp.eq.s32.totalorder %s23, 0
      %p92 = por %p90, %p91
      %s94 = sadd.s32 %s93, 1
      %p97 = scmp.eq.s32.totalorder %s17, 1
      %p98 = scmp.ne.s32.totalorder %s93, %s95
      %p99 = scmp.eq.s32.totalorder %s17, 0
      %p100 = por %p98, %p99
      %p101 = scmp.ne.s32.totalorder %s93, %s95
      %p102 = scmp.eq.s32.totalorder %s22, 1
      %p103 = por %p101, %p102
      %p104 = scmp.ne.s32.totalorder %s95, %s96
      %p105 = scmp.eq.s32.totalorder %s22, 0
      %p106 = por %p104, %p105
      %p107 = scmp.ne.s32.totalorder %s95, %s96
      %p108 = scmp.eq.s32.totalorder %s23, 1
      %p109 = por %p107, %p108
      %p111 = scmp.ne.s32.totalorder %s96, %s110
      %p112 = scmp.eq.s32.totalorder %s23, 0
      %p113 = por %p111, %p112
      %s114 = ssub.s32 %s17, %s24
      %p115 = scmp.eq.s32.totalorder %s114, 0
      %s117 = sadd.s32 %s116, 1
      %s118 = scalar_select %p115, %s116, %s117
      %p121 = pneg %p115
      %p122 = scmp.eq.s32.totalorder %s17, 1
      %p123 = por %p121, %p122
      %p124 = scmp.ne.s32.totalorder %s116, %s119
      %p125 = scmp.eq.s32.totalorder %s17, 0
      %p126 = por %p124, %p125
      %p127 = scmp.ne.s32.totalorder %s116, %s119
      %p128 = scmp.eq.s32.totalorder %s22, 1
      %p129 = por %p127, %p128
      %p130 = scmp.ne.s32.totalorder %s119, %s120
      %p131 = scmp.eq.s32.totalorder %s22, 0
      %p132 = por %p130, %p131
      %p133 = scmp.ne.s32.totalorder %s119, %s120
      %p134 = scmp.eq.s32.totalorder %s23, 1
      %p135 = por %p133, %p134
      %p137 = scmp.ne.s32.totalorder %s120, %s136
      %p138 = scmp.eq.s32.totalorder %s23, 0
      %p139 = por %p137, %p138
      %p140 = scmp.le.s32.totalorder 1, %s17
      %p141 = scmp.lt.s32.totalorder %s17, 3
      %p142 = pnand %p140, %p141
      %p143 = pneg %p142
      // Predicated region
      $region9: #{tpu_custom_call.1} parent=5 // pred_check
        _
      $region10: #{tpu_custom_call.1} parent=5 // pred_check_branch
        %145 = sbr.rel (%p142) target = $region12
      $region11: #{tpu_custom_call.1} parent=5 // pred_region
        %s146 = ssub.s32 %s17, 1
        // Predicated region
        $region13: #{tpu_custom_call.1} parent=11 // pred_check
          %p147 = pneg %p64
        $region14: #{tpu_custom_call.1} parent=11 // pred_check_branch
          %149 = sbr.rel (%p147) target = $region16
        $region15: #{tpu_custom_call.1} parent=11 // pred_region
          _
        $region16: #{tpu_custom_call.1} parent=11 // pred_fallthru
          _
        // Predicated region
        $region17: #{tpu_custom_call.1} parent=11 // pred_check
          %p150 = pneg %p85
        $region18: #{tpu_custom_call.1} parent=11 // pred_check_branch
          %152 = sbr.rel (%p150) target = $region20
        $region19: #{tpu_custom_call.1} parent=11 // pred_region
          %s154 = ssub.s32 2048, 2048
          %155 = vsyncadd [#allocation6], %s154
          %s156 = sshll.u32 [#allocation5], 4
          %s157 = int_to_ptr.vmem [resolvable:$true] %s156
          %162 = dma.hbm_to_vmem [thread:$0]  %s2, 2048, %s157, [#allocation6], 64, 64, 4
        $region20: #{tpu_custom_call.1} parent=11 // pred_fallthru
          _
        // Predicated region
        $region21: #{tpu_custom_call.1} parent=11 // pred_check
          %p163 = pneg %p106
        $region22: #{tpu_custom_call.1} parent=11 // pred_check_branch
          %165 = sbr.rel (%p163) target = $region24
        $region23: #{tpu_custom_call.1} parent=11 // pred_region
          %s167 = ssub.s32 8192, 8192
          %168 = vsyncadd [#allocation6], %s167
          %s169 = sshll.u32 [#allocation7], 4
          %s170 = int_to_ptr.vmem [resolvable:$true] %s169
          %175 = dma.hbm_to_vmem [thread:$0]  %s3, 8192, %s170, [#allocation6], 1024, 1024, 64
        $region24: #{tpu_custom_call.1} parent=11 // pred_fallthru
          _
      $region12: #{tpu_custom_call.1} parent=5 // pred_fallthru
        _
      %p176 = scmp.lt.s32.totalorder %s17, 2
      // Predicated region
      $region25: #{tpu_custom_call.1} parent=5 // pred_check
        %p177 = pneg %p176
      $region26: #{tpu_custom_call.1} parent=5 // pred_check_branch
        %179 = sbr.rel (%p177) target = $region28
      $region27: #{tpu_custom_call.1} parent=5 // pred_region
        // Predicated region
        $region29: #{tpu_custom_call.1} parent=27 // pred_check
          %p180 = pneg %p37
        $region30: #{tpu_custom_call.1} parent=27 // pred_check_branch
          %182 = sbr.rel (%p180) target = $region32
        $region31: #{tpu_custom_call.1} parent=27 // pred_region
          %s183 = sand.u32 %s27, 1
          %s184 = scalar_lea.sflag [#allocation3], %s183
          %s185 = sand.u32 %s27, 1
          %s186 = smul.addr %s185, 8
          %s187 = scalar_lea.vmem [#allocation2], %s186
          %s189 = ssub.s32 128, 128
          %190 = vsyncadd %s184, %s189
          %s191 = smul.addr %s17, 2
          %s192 = smul.addr %s191, 64
          %s193 = scalar_lea.hbm %s0, %s192
          %s194 = sshll.u32 %s187, 4
          %s195 = int_to_ptr.vmem [resolvable:$true] %s194
          %200 = dma.hbm_to_vmem [thread:$0]  %s193, 128, %s195, %s184, 64, 64, 4
        $region32: #{tpu_custom_call.1} parent=27 // pred_fallthru
          _
      $region28: #{tpu_custom_call.1} parent=5 // pred_fallthru
        _
      %p201 = scmp.le.s32.totalorder 1, %s17
      %p202 = scmp.lt.s32.totalorder %s17, 3
      %p203 = pnand %p201, %p202
      %p204 = pneg %p203
      // Predicated region
      $region33: #{tpu_custom_call.1} parent=5 // pred_check
        _
      $region34: #{tpu_custom_call.1} parent=5 // pred_check_branch
        %206 = sbr.rel (%p203) target = $region36
      $region35: #{tpu_custom_call.1} parent=5 // pred_region
        %s207 = ssub.s32 %s17, 1
        %s208 = sand.u32 %s30, 1
        %s209 = scalar_lea.sflag [#allocation3], %s208
        %s210 = sand.u32 %s30, 1
        %s211 = smul.addr %s210, 8
        %s212 = scalar_lea.vmem [#allocation2], %s211
        // Predicated region
        $region37: #{tpu_custom_call.1} parent=35 // pred_check
          %p213 = pneg %p43
        $region38: #{tpu_custom_call.1} parent=35 // pred_check_branch
          %215 = sbr.rel (%p213) target = $region40
        $region39: #{tpu_custom_call.1} parent=35 // pred_region
          %216 = dma.done %s209, 128
        $region40: #{tpu_custom_call.1} parent=35 // pred_fallthru
          _
        // Predicated region
        $region41: #{tpu_custom_call.1} parent=35 // pred_check
          %p217 = pneg %p85
        $region42: #{tpu_custom_call.1} parent=35 // pred_check_branch
          %219 = sbr.rel (%p217) target = $region44
        $region43: #{tpu_custom_call.1} parent=35 // pred_region
          %220 = dma.done [#allocation6], 2048
        $region44: #{tpu_custom_call.1} parent=35 // pred_fallthru
          _
        // Predicated region
        $region45: #{tpu_custom_call.1} parent=35 // pred_check
          %p221 = pneg %p106
        $region46: #{tpu_custom_call.1} parent=35 // pred_check_branch
          %223 = sbr.rel (%p221) target = $region48
        $region47: #{tpu_custom_call.1} parent=35 // pred_region
          %224 = dma.done [#allocation6], 8192
        $region48: #{tpu_custom_call.1} parent=35 // pred_fallthru
          _
        %s225 = sand.u32 %s30, 1
        %s226 = scalar_lea.sflag [#allocation3], %s225
        %s227 = sand.u32 %s30, 1
        %s228 = smul.addr %s227, 8
        %s229 = scalar_lea.vmem [#allocation2], %s228
        %p230 = pneg %p43
        %p231 = pneg %p40
        %p232 = pneg %p64
        %p233 = pneg %p61
        %p234 = pneg %p85
        %p235 = pneg %p82
        %p236 = pneg %p106
        %p237 = pneg %p103
        %p238 = pneg %p132
        %p239 = pneg %p129
        %s240 = sand.u32 %s119, 1
        %s241 = scalar_lea.sflag [#allocation4], %s240
        %s242 = sand.u32 %s119, 1
        %s243 = smul.addr %s242, 16
        %s244 = scalar_lea.vmem [#allocation8], %s243
        %v246 = vld [vmem:[%s212] sm:$0xf]
        %v247 = vld [vmem:[%s212 + $0x4] sm:$0xf]
        %v248 = vld [vmem:[#allocation7] sm:$0xff]
        %v249 = vld [vmem:[#allocation7 + $0x8] sm:$0xff]
        %v250 = vld [vmem:[#allocation7 + $0x10] sm:$0xff]
        %v251 = vld [vmem:[#allocation7 + $0x18] sm:$0xff]
        %v252 = vld [vmem:[#allocation7 + $0x20] sm:$0xff]
        %v253 = vld [vmem:[#allocation7 + $0x28] sm:$0xff]
        %v254 = vld [vmem:[#allocation7 + $0x30] sm:$0xff]
        %v255 = vld [vmem:[#allocation7 + $0x38] sm:$0xff]
        %v256 = vld [vmem:[#allocation7 + $0x40] sm:$0xff]
        %v257 = vld [vmem:[#allocation7 + $0x48] sm:$0xff]
        %v258 = vld [vmem:[#allocation7 + $0x50] sm:$0xff]
        %v259 = vld [vmem:[#allocation7 + $0x58] sm:$0xff]
        %v260 = vld [vmem:[#allocation7 + $0x60] sm:$0xff]
        %v261 = vld [vmem:[#allocation7 + $0x68] sm:$0xff]
        %v262 = vld [vmem:[#allocation7 + $0x70] sm:$0xff]
        %v263 = vld [vmem:[#allocation7 + $0x78] sm:$0xff]
        %v264 = vld [vmem:[#allocation7 + $0x80] sm:$0xff]
        %v265 = vld [vmem:[#allocation7 + $0x88] sm:$0xff]
        %v266 = vld [vmem:[#allocation7 + $0x90] sm:$0xff]
        %v267 = vld [vmem:[#allocation7 + $0x98] sm:$0xff]
        %v268 = vld [vmem:[#allocation7 + $0xa0] sm:$0xff]
        %v269 = vld [vmem:[#allocation7 + $0xa8] sm:$0xff]
        %v270 = vld [vmem:[#allocation7 + $0xb0] sm:$0xff]
        %v271 = vld [vmem:[#allocation7 + $0xb8] sm:$0xff]
        %v272 = vld [vmem:[#allocation7 + $0xc0] sm:$0xff]
        %v273 = vld [vmem:[#allocation7 + $0xc8] sm:$0xff]
        %v274 = vld [vmem:[#allocation7 + $0xd0] sm:$0xff]
        %v275 = vld [vmem:[#allocation7 + $0xd8] sm:$0xff]
        %v276 = vld [vmem:[#allocation7 + $0xe0] sm:$0xff]
        %v277 = vld [vmem:[#allocation7 + $0xe8] sm:$0xff]
        %v278 = vld [vmem:[#allocation7 + $0xf0] sm:$0xff]
        %v279 = vld [vmem:[#allocation7 + $0xf8] sm:$0xff]
        %v280 = vld [vmem:[#allocation7 + $0x100] sm:$0xff]
        %v281 = vld [vmem:[#allocation7 + $0x108] sm:$0xff]
        %v282 = vld [vmem:[#allocation7 + $0x110] sm:$0xff]
        %v283 = vld [vmem:[#allocation7 + $0x118] sm:$0xff]
        %v284 = vld [vmem:[#allocation7 + $0x120] sm:$0xff]
        %v285 = vld [vmem:[#allocation7 + $0x128] sm:$0xff]
        %v286 = vld [vmem:[#allocation7 + $0x130] sm:$0xff]
        %v287 = vld [vmem:[#allocation7 + $0x138] sm:$0xff]
        %v288 = vld [vmem:[#allocation7 + $0x140] sm:$0xff]
        %v289 = vld [vmem:[#allocation7 + $0x148] sm:$0xff]
        %v290 = vld [vmem:[#allocation7 + $0x150] sm:$0xff]
        %v291 = vld [vmem:[#allocation7 + $0x158] sm:$0xff]
        %v292 = vld [vmem:[#allocation7 + $0x160] sm:$0xff]
        %v293 = vld [vmem:[#allocation7 + $0x168] sm:$0xff]
        %v294 = vld [vmem:[#allocation7 + $0x170] sm:$0xff]
        %v295 = vld [vmem:[#allocation7 + $0x178] sm:$0xff]
        %v296 = vld [vmem:[#allocation7 + $0x180] sm:$0xff]
        %v297 = vld [vmem:[#allocation7 + $0x188] sm:$0xff]
        %v298 = vld [vmem:[#allocation7 + $0x190] sm:$0xff]
        %v299 = vld [vmem:[#allocation7 + $0x198] sm:$0xff]
        %v300 = vld [vmem:[#allocation7 + $0x1a0] sm:$0xff]
        %v301 = vld [vmem:[#allocation7 + $0x1a8] sm:$0xff]
        %v302 = vld [vmem:[#allocation7 + $0x1b0] sm:$0xff]
        %v303 = vld [vmem:[#allocation7 + $0x1b8] sm:$0xff]
        %v304 = vld [vmem:[#allocation7 + $0x1c0] sm:$0xff]
        %v305 = vld [vmem:[#allocation7 + $0x1c8] sm:$0xff]
        %v306 = vld [vmem:[#allocation7 + $0x1d0] sm:$0xff]
        %v307 = vld [vmem:[#allocation7 + $0x1d8] sm:$0xff]
        %v308 = vld [vmem:[#allocation7 + $0x1e0] sm:$0xff]
        %v309 = vld [vmem:[#allocation7 + $0x1e8] sm:$0xff]
        %v310 = vld [vmem:[#allocation7 + $0x1f0] sm:$0xff]
        %v311 = vld [vmem:[#allocation7 + $0x1f8] sm:$0xff]
        %v314 = vunpack.c.l.b16 %v246
        %v315 = vunpack.c.l.b16 %v247
        %v316 = vpack.c.b16 %v315, %v314
        %v381 = vunpack.c.l.b16 %v248
        %v382 = vunpack.c.h.b16 %v248
        %v383 = vunpack.c.l.b16 %v249
        %v384 = vunpack.c.h.b16 %v249
        %v385 = vunpack.c.l.b16 %v250
        %v386 = vunpack.c.h.b16 %v250
        %v387 = vunpack.c.l.b16 %v251
        %v388 = vunpack.c.h.b16 %v251
        %v389 = vunpack.c.l.b16 %v252
        %v390 = vunpack.c.h.b16 %v252
        %v391 = vunpack.c.l.b16 %v253
        %v392 = vunpack.c.h.b16 %v253
        %v393 = vunpack.c.l.b16 %v254
        %v394 = vunpack.c.h.b16 %v254
        %v395 = vunpack.c.l.b16 %v255
        %v396 = vunpack.c.h.b16 %v255
        %v397 = vunpack.c.l.b16 %v256
        %v398 = vunpack.c.h.b16 %v256
        %v399 = vunpack.c.l.b16 %v257
        %v400 = vunpack.c.h.b16 %v257
        %v401 = vunpack.c.l.b16 %v258
        %v402 = vunpack.c.h.b16 %v258
        %v403 = vunpack.c.l.b16 %v259
        %v404 = vunpack.c.h.b16 %v259
        %v405 = vunpack.c.l.b16 %v260
        %v406 = vunpack.c.h.b16 %v260
        %v407 = vunpack.c.l.b16 %v261
        %v408 = vunpack.c.h.b16 %v261
        %v409 = vunpack.c.l.b16 %v262
        %v410 = vunpack.c.h.b16 %v262
        %v411 = vunpack.c.l.b16 %v263
        %v412 = vunpack.c.h.b16 %v263
        %v413 = vunpack.c.l.b16 %v264
        %v414 = vunpack.c.h.b16 %v264
        %v415 = vunpack.c.l.b16 %v265
        %v416 = vunpack.c.h.b16 %v265
        %v417 = vunpack.c.l.b16 %v266
        %v418 = vunpack.c.h.b16 %v266
        %v419 = vunpack.c.l.b16 %v267
        %v420 = vunpack.c.h.b16 %v267
        %v421 = vunpack.c.l.b16 %v268
        %v422 = vunpack.c.h.b16 %v268
        %v423 = vunpack.c.l.b16 %v269
        %v424 = vunpack.c.h.b16 %v269
        %v425 = vunpack.c.l.b16 %v270
        %v426 = vunpack.c.h.b16 %v270
        %v427 = vunpack.c.l.b16 %v271
        %v428 = vunpack.c.h.b16 %v271
        %v429 = vunpack.c.l.b16 %v272
        %v430 = vunpack.c.h.b16 %v272
        %v431 = vunpack.c.l.b16 %v273
        %v432 = vunpack.c.h.b16 %v273
        %v433 = vunpack.c.l.b16 %v274
        %v434 = vunpack.c.h.b16 %v274
        %v435 = vunpack.c.l.b16 %v275
        %v436 = vunpack.c.h.b16 %v275
        %v437 = vunpack.c.l.b16 %v276
        %v438 = vunpack.c.h.b16 %v276
        %v439 = vunpack.c.l.b16 %v277
        %v440 = vunpack.c.h.b16 %v277
        %v441 = vunpack.c.l.b16 %v278
        %v442 = vunpack.c.h.b16 %v278
        %v443 = vunpack.c.l.b16 %v279
        %v444 = vunpack.c.h.b16 %v279
        %v445 = vunpack.c.l.b16 %v280
        %v446 = vunpack.c.h.b16 %v280
        %v447 = vunpack.c.l.b16 %v281
        %v448 = vunpack.c.h.b16 %v281
        %v449 = vunpack.c.l.b16 %v282
        %v450 = vunpack.c.h.b16 %v282
        %v451 = vunpack.c.l.b16 %v283
        %v452 = vunpack.c.h.b16 %v283
        %v453 = vunpack.c.l.b16 %v284
        %v454 = vunpack.c.h.b16 %v284
        %v455 = vunpack.c.l.b16 %v285
        %v456 = vunpack.c.h.b16 %v285
        %v457 = vunpack.c.l.b16 %v286
        %v458 = vunpack.c.h.b16 %v286
        %v459 = vunpack.c.l.b16 %v287
        %v460 = vunpack.c.h.b16 %v287
        %v461 = vunpack.c.l.b16 %v288
        %v462 = vunpack.c.h.b16 %v288
        %v463 = vunpack.c.l.b16 %v289
        %v464 = vunpack.c.h.b16 %v289
        %v465 = vunpack.c.l.b16 %v290
        %v466 = vunpack.c.h.b16 %v290
        %v467 = vunpack.c.l.b16 %v291
        %v468 = vunpack.c.h.b16 %v291
        %v469 = vunpack.c.l.b16 %v292
        %v470 = vunpack.c.h.b16 %v292
        %v471 = vunpack.c.l.b16 %v293
        %v472 = vunpack.c.h.b16 %v293
        %v473 = vunpack.c.l.b16 %v294
        %v474 = vunpack.c.h.b16 %v294
        %v475 = vunpack.c.l.b16 %v295
        %v476 = vunpack.c.h.b16 %v295
        %v477 = vunpack.c.l.b16 %v296
        %v478 = vunpack.c.h.b16 %v296
        %v479 = vunpack.c.l.b16 %v297
        %v480 = vunpack.c.h.b16 %v297
        %v481 = vunpack.c.l.b16 %v298
        %v482 = vunpack.c.h.b16 %v298
        %v483 = vunpack.c.l.b16 %v299
        %v484 = vunpack.c.h.b16 %v299
        %v485 = vunpack.c.l.b16 %v300
        %v486 = vunpack.c.h.b16 %v300
        %v487 = vunpack.c.l.b16 %v301
        %v488 = vunpack.c.h.b16 %v301
        %v489 = vunpack.c.l.b16 %v302
        %v490 = vunpack.c.h.b16 %v302
        %v491 = vunpack.c.l.b16 %v303
        %v492 = vunpack.c.h.b16 %v303
        %v493 = vunpack.c.l.b16 %v304
        %v494 = vunpack.c.h.b16 %v304
        %v495 = vunpack.c.l.b16 %v305
        %v496 = vunpack.c.h.b16 %v305
        %v497 = vunpack.c.l.b16 %v306
        %v498 = vunpack.c.h.b16 %v306
        %v499 = vunpack.c.l.b16 %v307
        %v500 = vunpack.c.h.b16 %v307
        %v501 = vunpack.c.l.b16 %v308
        %v502 = vunpack.c.h.b16 %v308
        %v503 = vunpack.c.l.b16 %v309
        %v504 = vunpack.c.h.b16 %v309
        %v505 = vunpack.c.l.b16 %v310
        %v506 = vunpack.c.h.b16 %v310
        %v507 = vunpack.c.l.b16 %v311
        %v508 = vunpack.c.h.b16 %v311
        %v509 = vpack.c.b16 %v397, %v381
        %v510 = vpack.c.b16 %v398, %v382
        %v511 = vpack.c.b16 %v399, %v383
        %v512 = vpack.c.b16 %v400, %v384
        %v513 = vpack.c.b16 %v401, %v385
        %v514 = vpack.c.b16 %v402, %v386
        %v515 = vpack.c.b16 %v403, %v387
        %v516 = vpack.c.b16 %v404, %v388
        %v517 = vpack.c.b16 %v405, %v389
        %v518 = vpack.c.b16 %v406, %v390
        %v519 = vpack.c.b16 %v407, %v391
        %v520 = vpack.c.b16 %v408, %v392
        %v521 = vpack.c.b16 %v409, %v393
        %v522 = vpack.c.b16 %v410, %v394
        %v523 = vpack.c.b16 %v411, %v395
        %v524 = vpack.c.b16 %v412, %v396
        %v525 = vpack.c.b16 %v429, %v413
        %v526 = vpack.c.b16 %v430, %v414
        %v527 = vpack.c.b16 %v431, %v415
        %v528 = vpack.c.b16 %v432, %v416
        %v529 = vpack.c.b16 %v433, %v417
        %v530 = vpack.c.b16 %v434, %v418
        %v531 = vpack.c.b16 %v435, %v419
        %v532 = vpack.c.b16 %v436, %v420
        %v533 = vpack.c.b16 %v437, %v421
        %v534 = vpack.c.b16 %v438, %v422
        %v535 = vpack.c.b16 %v439, %v423
        %v536 = vpack.c.b16 %v440, %v424
        %v537 = vpack.c.b16 %v441, %v425
        %v538 = vpack.c.b16 %v442, %v426
        %v539 = vpack.c.b16 %v443, %v427
        %v540 = vpack.c.b16 %v444, %v428
        %v541 = vpack.c.b16 %v461, %v445
        %v542 = vpack.c.b16 %v462, %v446
        %v543 = vpack.c.b16 %v463, %v447
        %v544 = vpack.c.b16 %v464, %v448
        %v545 = vpack.c.b16 %v465, %v449
        %v546 = vpack.c.b16 %v466, %v450
        %v547 = vpack.c.b16 %v467, %v451
        %v548 = vpack.c.b16 %v468, %v452
        %v549 = vpack.c.b16 %v469, %v453
        %v550 = vpack.c.b16 %v470, %v454
        %v551 = vpack.c.b16 %v471, %v455
        %v552 = vpack.c.b16 %v472, %v456
        %v553 = vpack.c.b16 %v473, %v457
        %v554 = vpack.c.b16 %v474, %v458
        %v555 = vpack.c.b16 %v475, %v459
        %v556 = vpack.c.b16 %v476, %v460
        %v557 = vpack.c.b16 %v493, %v477
        %v558 = vpack.c.b16 %v494, %v478
        %v559 = vpack.c.b16 %v495, %v479
        %v560 = vpack.c.b16 %v496, %v480
        %v561 = vpack.c.b16 %v497, %v481
        %v562 = vpack.c.b16 %v498, %v482
        %v563 = vpack.c.b16 %v499, %v483
        %v564 = vpack.c.b16 %v500, %v484
        %v565 = vpack.c.b16 %v501, %v485
        %v566 = vpack.c.b16 %v502, %v486
        %v567 = vpack.c.b16 %v503, %v487
        %v568 = vpack.c.b16 %v504, %v488
        %v569 = vpack.c.b16 %v505, %v489
        %v570 = vpack.c.b16 %v506, %v490
        %v571 = vpack.c.b16 %v507, %v491
        %v572 = vpack.c.b16 %v508, %v492
        %vm637 = vcmask 523264
        %v639 = vsel %vm637, %v316, 0
        %641 = vmatprep.subr.bf16.mxu0 0
        %642 = vmatpush1.bf16.msra.mxu0 0
        %643 = vmatprep.subr.bf16.mxu0 0
        %644 = vmatpush1.bf16.msra.mxu0 0
        %645 = vmatprep.subr.bf16.mxu0 0
        %646 = vmatpush1.bf16.msra.mxu0 0
        %647 = vmatprep.subr.bf16.mxu0 0
        %648 = vmatpush1.bf16.msra.mxu0 0
        %649 = vmatprep.subr.bf16.mxu0 %v558
        %650 = vmatpush1.bf16.msra.mxu0 %v557
        %651 = vmatprep.subr.bf16.mxu0 %v542
        %652 = vmatpush1.bf16.msra.mxu0 %v541
        %653 = vmatprep.subr.bf16.mxu0 %v526
        %654 = vmatpush1.bf16.msra.mxu0 %v525
        %655 = vmatprep.subr.bf16.mxu0 %v510
        %656 = vmatpush1.bf16.msra.mxu0 %v509
        %657 = vmatprep.subr.bf16.mxu0 0
        %658 = vmatpush2.bf16.msra.mxu0 0
        %659 = vmatprep.subr.bf16.mxu0 0
        %660 = vmatpush2.bf16.msra.mxu0 0
        %661 = vmatprep.subr.bf16.mxu0 0
        %662 = vmatpush2.bf16.msra.mxu0 0
        %663 = vmatprep.subr.bf16.mxu0 0
        %664 = vmatpush2.bf16.msra.mxu0 0
        %665 = vmatprep.subr.bf16.mxu0 0
        %666 = vmatpush2.bf16.msra.mxu0 0
        %667 = vmatprep.subr.bf16.mxu0 0
        %668 = vmatpush2.bf16.msra.mxu0 0
        %669 = vmatprep.subr.bf16.mxu0 0
        %670 = vmatpush2.bf16.msra.mxu0 0
        %671 = vmatprep.subr.bf16.mxu0 0
        %672 = vmatpush2.bf16.msra.mxu0 0
        %673 = vmatprep.mubr.bf16.mxu0 0
        %674 = vmatmul.mubr.bf16.gmra.mxu0 %v639
        %v675 = vpop.f32.mrf.mxu0
        %v676 = vadd.f32 0.0, %v675
        %v677 = vpop.f32.mrf.mxu0
        %v678 = vadd.f32 0.0, %v677
        %v679 = vpop.f32.mrf.mxu0
        %v680 = vadd.f32 0.0, %v679
        %v681 = vpop.f32.mrf.mxu0
        %v682 = vadd.f32 0.0, %v681
        %683 = vdwg.mxu0
        %684 = vmatprep.subr.bf16.mxu0 0
        %685 = vmatpush1.bf16.msra.mxu0 0
        %686 = vmatprep.subr.bf16.mxu0 0
        %687 = vmatpush1.bf16.msra.mxu0 0
        %688 = vmatprep.subr.bf16.mxu0 0
        %689 = vmatpush1.bf16.msra.mxu0 0
        %690 = vmatprep.subr.bf16.mxu0 0
        %691 = vmatpush1.bf16.msra.mxu0 0
        %692 = vmatprep.subr.bf16.mxu0 %v560
        %693 = vmatpush1.bf16.msra.mxu0 %v559
        %694 = vmatprep.subr.bf16.mxu0 %v544
        %695 = vmatpush1.bf16.msra.mxu0 %v543
        %696 = vmatprep.subr.bf16.mxu0 %v528
        %697 = vmatpush1.bf16.msra.mxu0 %v527
        %698 = vmatprep.subr.bf16.mxu0 %v512
        %699 = vmatpush1.bf16.msra.mxu0 %v511
        %700 = vmatprep.subr.bf16.mxu0 0
        %701 = vmatpush2.bf16.msra.mxu0 0
        %702 = vmatprep.subr.bf16.mxu0 0
        %703 = vmatpush2.bf16.msra.mxu0 0
        %704 = vmatprep.subr.bf16.mxu0 0
        %705 = vmatpush2.bf16.msra.mxu0 0
        %706 = vmatprep.subr.bf16.mxu0 0
        %707 = vmatpush2.bf16.msra.mxu0 0
        %708 = vmatprep.subr.bf16.mxu0 0
        %709 = vmatpush2.bf16.msra.mxu0 0
        %710 = vmatprep.subr.bf16.mxu0 0
        %711 = vmatpush2.bf16.msra.mxu0 0
        %712 = vmatprep.subr.bf16.mxu0 0
        %713 = vmatpush2.bf16.msra.mxu0 0
        %714 = vmatprep.subr.bf16.mxu0 0
        %715 = vmatpush2.bf16.msra.mxu0 0
        %716 = vmatprep.mubr.bf16.mxu0 0
        %717 = vmatmul.mubr.bf16.gmra.mxu0 %v639
        %v718 = vpop.f32.mrf.mxu0
        %v719 = vadd.f32 0.0, %v718
        %v720 = vpop.f32.mrf.mxu0
        %v721 = vadd.f32 0.0, %v720
        %v722 = vpop.f32.mrf.mxu0
        %v723 = vadd.f32 0.0, %v722
        %v724 = vpop.f32.mrf.mxu0
        %v725 = vadd.f32 0.0, %v724
        %726 = vdwg.mxu0
        %727 = vmatprep.subr.bf16.mxu0 0
        %728 = vmatpush1.bf16.msra.mxu0 0
        %729 = vmatprep.subr.bf16.mxu0 0
        %730 = vmatpush1.bf16.msra.mxu0 0
        %731 = vmatprep.subr.bf16.mxu0 0
        %732 = vmatpush1.bf16.msra.mxu0 0
        %733 = vmatprep.subr.bf16.mxu0 0
        %734 = vmatpush1.bf16.msra.mxu0 0
        %735 = vmatprep.subr.bf16.mxu0 %v562
        %736 = vmatpush1.bf16.msra.mxu0 %v561
        %737 = vmatprep.subr.bf16.mxu0 %v546
        %738 = vmatpush1.bf16.msra.mxu0 %v545
        %739 = vmatprep.subr.bf16.mxu0 %v530
        %740 = vmatpush1.bf16.msra.mxu0 %v529
        %741 = vmatprep.subr.bf16.mxu0 %v514
        %742 = vmatpush1.bf16.msra.mxu0 %v513
        %743 = vmatprep.subr.bf16.mxu0 0
        %744 = vmatpush2.bf16.msra.mxu0 0
        %745 = vmatprep.subr.bf16.mxu0 0
        %746 = vmatpush2.bf16.msra.mxu0 0
        %747 = vmatprep.subr.bf16.mxu0 0
        %748 = vmatpush2.bf16.msra.mxu0 0
        %749 = vmatprep.subr.bf16.mxu0 0
        %750 = vmatpush2.bf16.msra.mxu0 0
        %751 = vmatprep.subr.bf16.mxu0 0
        %752 = vmatpush2.bf16.msra.mxu0 0
        %753 = vmatprep.subr.bf16.mxu0 0
        %754 = vmatpush2.bf16.msra.mxu0 0
        %755 = vmatprep.subr.bf16.mxu0 0
        %756 = vmatpush2.bf16.msra.mxu0 0
        %757 = vmatprep.subr.bf16.mxu0 0
        %758 = vmatpush2.bf16.msra.mxu0 0
        %759 = vmatprep.mubr.bf16.mxu0 0
        %760 = vmatmul.mubr.bf16.gmra.mxu0 %v639
        %v761 = vpop.f32.mrf.mxu0
        %v762 = vadd.f32 0.0, %v761
        %v763 = vpop.f32.mrf.mxu0
        %v764 = vadd.f32 0.0, %v763
        %v765 = vpop.f32.mrf.mxu0
        %v766 = vadd.f32 0.0, %v765
        %v767 = vpop.f32.mrf.mxu0
        %v768 = vadd.f32 0.0, %v767
        %769 = vdwg.mxu0
        %770 = vmatprep.subr.bf16.mxu0 0
        %771 = vmatpush1.bf16.msra.mxu0 0
        %772 = vmatprep.subr.bf16.mxu0 0
        %773 = vmatpush1.bf16.msra.mxu0 0
        %774 = vmatprep.subr.bf16.mxu0 0
        %775 = vmatpush1.bf16.msra.mxu0 0
        %776 = vmatprep.subr.bf16.mxu0 0
        %777 = vmatpush1.bf16.msra.mxu0 0
        %778 = vmatprep.subr.bf16.mxu0 %v564
        %779 = vmatpush1.bf16.msra.mxu0 %v563
        %780 = vmatprep.subr.bf16.mxu0 %v548
        %781 = vmatpush1.bf16.msra.mxu0 %v547
        %782 = vmatprep.subr.bf16.mxu0 %v532
        %783 = vmatpush1.bf16.msra.mxu0 %v531
        %784 = vmatprep.subr.bf16.mxu0 %v516
        %785 = vmatpush1.bf16.msra.mxu0 %v515
        %786 = vmatprep.subr.bf16.mxu0 0
        %787 = vmatpush2.bf16.msra.mxu0 0
        %788 = vmatprep.subr.bf16.mxu0 0
        %789 = vmatpush2.bf16.msra.mxu0 0
        %790 = vmatprep.subr.bf16.mxu0 0
        %791 = vmatpush2.bf16.msra.mxu0 0
        %792 = vmatprep.subr.bf16.mxu0 0
        %793 = vmatpush2.bf16.msra.mxu0 0
        %794 = vmatprep.subr.bf16.mxu0 0
        %795 = vmatpush2.bf16.msra.mxu0 0
        %796 = vmatprep.subr.bf16.mxu0 0
        %797 = vmatpush2.bf16.msra.mxu0 0
        %798 = vmatprep.subr.bf16.mxu0 0
        %799 = vmatpush2.bf16.msra.mxu0 0
        %800 = vmatprep.subr.bf16.mxu0 0
        %801 = vmatpush2.bf16.msra.mxu0 0
        %802 = vmatprep.mubr.bf16.mxu0 0
        %803 = vmatmul.mubr.bf16.gmra.mxu0 %v639
        %v804 = vpop.f32.mrf.mxu0
        %v805 = vadd.f32 0.0, %v804
        %v806 = vpop.f32.mrf.mxu0
        %v807 = vadd.f32 0.0, %v806
        %v808 = vpop.f32.mrf.mxu0
        %v809 = vadd.f32 0.0, %v808
        %v810 = vpop.f32.mrf.mxu0
        %v811 = vadd.f32 0.0, %v810
        %812 = vdwg.mxu0
        %813 = vmatprep.subr.bf16.mxu0 0
        %814 = vmatpush1.bf16.msra.mxu0 0
        %815 = vmatprep.subr.bf16.mxu0 0
        %816 = vmatpush1.bf16.msra.mxu0 0
        %817 = vmatprep.subr.bf16.mxu0 0
        %818 = vmatpush1.bf16.msra.mxu0 0
        %819 = vmatprep.subr.bf16.mxu0 0
        %820 = vmatpush1.bf16.msra.mxu0 0
        %821 = vmatprep.subr.bf16.mxu0 %v566
        %822 = vmatpush1.bf16.msra.mxu0 %v565
        %823 = vmatprep.subr.bf16.mxu0 %v550
        %824 = vmatpush1.bf16.msra.mxu0 %v549
        %825 = vmatprep.subr.bf16.mxu0 %v534
        %826 = vmatpush1.bf16.msra.mxu0 %v533
        %827 = vmatprep.subr.bf16.mxu0 %v518
        %828 = vmatpush1.bf16.msra.mxu0 %v517
        %829 = vmatprep.subr.bf16.mxu0 0
        %830 = vmatpush2.bf16.msra.mxu0 0
        %831 = vmatprep.subr.bf16.mxu0 0
        %832 = vmatpush2.bf16.msra.mxu0 0
        %833 = vmatprep.subr.bf16.mxu0 0
        %834 = vmatpush2.bf16.msra.mxu0 0
        %835 = vmatprep.subr.bf16.mxu0 0
        %836 = vmatpush2.bf16.msra.mxu0 0
        %837 = vmatprep.subr.bf16.mxu0 0
        %838 = vmatpush2.bf16.msra.mxu0 0
        %839 = vmatprep.subr.bf16.mxu0 0
        %840 = vmatpush2.bf16.msra.mxu0 0
        %841 = vmatprep.subr.bf16.mxu0 0
        %842 = vmatpush2.bf16.msra.mxu0 0
        %843 = vmatprep.subr.bf16.mxu0 0
        %844 = vmatpush2.bf16.msra.mxu0 0
        %845 = vmatprep.mubr.bf16.mxu0 0
        %846 = vmatmul.mubr.bf16.gmra.mxu0 %v639
        %v847 = vpop.f32.mrf.mxu0
        %v848 = vadd.f32 0.0, %v847
        %v849 = vpop.f32.mrf.mxu0
        %v850 = vadd.f32 0.0, %v849
        %v851 = vpop.f32.mrf.mxu0
        %v852 = vadd.f32 0.0, %v851
        %v853 = vpop.f32.mrf.mxu0
        %v854 = vadd.f32 0.0, %v853
        %855 = vdwg.mxu0
        %856 = vmatprep.subr.bf16.mxu0 0
        %857 = vmatpush1.bf16.msra.mxu0 0
        %858 = vmatprep.subr.bf16.mxu0 0
        %859 = vmatpush1.bf16.msra.mxu0 0
        %860 = vmatprep.subr.bf16.mxu0 0
        %861 = vmatpush1.bf16.msra.mxu0 0
        %862 = vmatprep.subr.bf16.mxu0 0
        %863 = vmatpush1.bf16.msra.mxu0 0
        %864 = vmatprep.subr.bf16.mxu0 %v568
        %865 = vmatpush1.bf16.msra.mxu0 %v567
        %866 = vmatprep.subr.bf16.mxu0 %v552
        %867 = vmatpush1.bf16.msra.mxu0 %v551
        %868 = vmatprep.subr.bf16.mxu0 %v536
        %869 = vmatpush1.bf16.msra.mxu0 %v535
        %870 = vmatprep.subr.bf16.mxu0 %v520
        %871 = vmatpush1.bf16.msra.mxu0 %v519
        %872 = vmatprep.subr.bf16.mxu0 0
        %873 = vmatpush2.bf16.msra.mxu0 0
        %874 = vmatprep.subr.bf16.mxu0 0
        %875 = vmatpush2.bf16.msra.mxu0 0
        %876 = vmatprep.subr.bf16.mxu0 0
        %877 = vmatpush2.bf16.msra.mxu0 0
        %878 = vmatprep.subr.bf16.mxu0 0
        %879 = vmatpush2.bf16.msra.mxu0 0
        %880 = vmatprep.subr.bf16.mxu0 0
        %881 = vmatpush2.bf16.msra.mxu0 0
        %882 = vmatprep.subr.bf16.mxu0 0
        %883 = vmatpush2.bf16.msra.mxu0 0
        %884 = vmatprep.subr.bf16.mxu0 0
        %885 = vmatpush2.bf16.msra.mxu0 0
        %886 = vmatprep.subr.bf16.mxu0 0
        %887 = vmatpush2.bf16.msra.mxu0 0
        %888 = vmatprep.mubr.bf16.mxu0 0
        %889 = vmatmul.mubr.bf16.gmra.mxu0 %v639
        %v890 = vpop.f32.mrf.mxu0
        %v891 = vadd.f32 0.0, %v890
        %v892 = vpop.f32.mrf.mxu0
        %v893 = vadd.f32 0.0, %v892
        %v894 = vpop.f32.mrf.mxu0
        %v895 = vadd.f32 0.0, %v894
        %v896 = vpop.f32.mrf.mxu0
        %v897 = vadd.f32 0.0, %v896
        %898 = vdwg.mxu0
        %899 = vmatprep.subr.bf16.mxu0 0
        %900 = vmatpush1.bf16.msra.mxu0 0
        %901 = vmatprep.subr.bf16.mxu0 0
        %902 = vmatpush1.bf16.msra.mxu0 0
        %903 = vmatprep.subr.bf16.mxu0 0
        %904 = vmatpush1.bf16.msra.mxu0 0
        %905 = vmatprep.subr.bf16.mxu0 0
        %906 = vmatpush1.bf16.msra.mxu0 0
        %907 = vmatprep.subr.bf16.mxu0 %v570
        %908 = vmatpush1.bf16.msra.mxu0 %v569
        %909 = vmatprep.subr.bf16.mxu0 %v554
        %910 = vmatpush1.bf16.msra.mxu0 %v553
        %911 = vmatprep.subr.bf16.mxu0 %v538
        %912 = vmatpush1.bf16.msra.mxu0 %v537
        %913 = vmatprep.subr.bf16.mxu0 %v522
        %914 = vmatpush1.bf16.msra.mxu0 %v521
        %915 = vmatprep.subr.bf16.mxu0 0
        %916 = vmatpush2.bf16.msra.mxu0 0
        %917 = vmatprep.subr.bf16.mxu0 0
        %918 = vmatpush2.bf16.msra.mxu0 0
        %919 = vmatprep.subr.bf16.mxu0 0
        %920 = vmatpush2.bf16.msra.mxu0 0
        %921 = vmatprep.subr.bf16.mxu0 0
        %922 = vmatpush2.bf16.msra.mxu0 0
        %923 = vmatprep.subr.bf16.mxu0 0
        %924 = vmatpush2.bf16.msra.mxu0 0
        %925 = vmatprep.subr.bf16.mxu0 0
        %926 = vmatpush2.bf16.msra.mxu0 0
        %927 = vmatprep.subr.bf16.mxu0 0
        %928 = vmatpush2.bf16.msra.mxu0 0
        %929 = vmatprep.subr.bf16.mxu0 0
        %930 = vmatpush2.bf16.msra.mxu0 0
        %931 = vmatprep.mubr.bf16.mxu0 0
        %932 = vmatmul.mubr.bf16.gmra.mxu0 %v639
        %v933 = vpop.f32.mrf.mxu0
        %v934 = vadd.f32 0.0, %v933
        %v935 = vpop.f32.mrf.mxu0
        %v936 = vadd.f32 0.0, %v935
        %v937 = vpop.f32.mrf.mxu0
        %v938 = vadd.f32 0.0, %v937
        %v939 = vpop.f32.mrf.mxu0
        %v940 = vadd.f32 0.0, %v939
        %941 = vdwg.mxu0
        %942 = vmatprep.subr.bf16.mxu0 0
        %943 = vmatpush1.bf16.msra.mxu0 0
        %944 = vmatprep.subr.bf16.mxu0 0
        %945 = vmatpush1.bf16.msra.mxu0 0
        %946 = vmatprep.subr.bf16.mxu0 0
        %947 = vmatpush1.bf16.msra.mxu0 0
        %948 = vmatprep.subr.bf16.mxu0 0
        %949 = vmatpush1.bf16.msra.mxu0 0
        %950 = vmatprep.subr.bf16.mxu0 %v572
        %951 = vmatpush1.bf16.msra.mxu0 %v571
        %952 = vmatprep.subr.bf16.mxu0 %v556
        %953 = vmatpush1.bf16.msra.mxu0 %v555
        %954 = vmatprep.subr.bf16.mxu0 %v540
        %955 = vmatpush1.bf16.msra.mxu0 %v539
        %956 = vmatprep.subr.bf16.mxu0 %v524
        %957 = vmatpush1.bf16.msra.mxu0 %v523
        %958 = vmatprep.subr.bf16.mxu0 0
        %959 = vmatpush2.bf16.msra.mxu0 0
        %960 = vmatprep.subr.bf16.mxu0 0
        %961 = vmatpush2.bf16.msra.mxu0 0
        %962 = vmatprep.subr.bf16.mxu0 0
        %963 = vmatpush2.bf16.msra.mxu0 0
        %964 = vmatprep.subr.bf16.mxu0 0
        %965 = vmatpush2.bf16.msra.mxu0 0
        %966 = vmatprep.subr.bf16.mxu0 0
        %967 = vmatpush2.bf16.msra.mxu0 0
        %968 = vmatprep.subr.bf16.mxu0 0
        %969 = vmatpush2.bf16.msra.mxu0 0
        %970 = vmatprep.subr.bf16.mxu0 0
        %971 = vmatpush2.bf16.msra.mxu0 0
        %972 = vmatprep.subr.bf16.mxu0 0
        %973 = vmatpush2.bf16.msra.mxu0 0
        %974 = vmatprep.mubr.bf16.mxu0 0
        %975 = vmatmul.mubr.bf16.gmra.mxu0 %v639
        %v976 = vpop.f32.mrf.mxu0
        %v977 = vadd.f32 0.0, %v976
        %v978 = vpop.f32.mrf.mxu0
        %v979 = vadd.f32 0.0, %v978
        %v980 = vpop.f32.mrf.mxu0
        %v981 = vadd.f32 0.0, %v980
        %v982 = vpop.f32.mrf.mxu0
        %v983 = vadd.f32 0.0, %v982
        %984 = vdwg.mxu0
        %v985 = vpack.c.bf16 %v680, %v676
        %v986 = vpack.c.bf16 %v682, %v678
        %v987 = vpack.c.bf16 %v723, %v719
        %v988 = vpack.c.bf16 %v725, %v721
        %v989 = vpack.c.bf16 %v766, %v762
        %v990 = vpack.c.bf16 %v768, %v764
        %v991 = vpack.c.bf16 %v809, %v805
        %v992 = vpack.c.bf16 %v811, %v807
        %v993 = vpack.c.bf16 %v852, %v848
        %v994 = vpack.c.bf16 %v854, %v850
        %v995 = vpack.c.bf16 %v895, %v891
        %v996 = vpack.c.bf16 %v897, %v893
        %v997 = vpack.c.bf16 %v938, %v934
        %v998 = vpack.c.bf16 %v940, %v936
        %v999 = vpack.c.bf16 %v981, %v977
        %v1000 = vpack.c.bf16 %v983, %v979
        %v1001 = vld [vmem:[%s1] sm:$0x1]
        %v1003 = vlaneseq
        %v1004 = vshrl.u32 %v1003, 7
        %v1005 = vsub.s32 0, %v1004
        %v1006 = vrot.slane %v1001, %v1005
        %v1008 = vld [vmem:[#allocation5] sm:$0xf]
        %v1009 = vld [vmem:[#allocation5 + $0x4] sm:$0xf]
        %v1012 = vunpack.c.l.b16 %v1008
        %v1013 = vunpack.c.l.b16 %v1009
        %v1014 = vpack.c.b16 %v1013, %v1012
        %vm1015 = vcmask 130048
        %v1017 = vsel %vm1015, %v1014, 0
        %1019 = vmatprep.subr.bf16.mxu0 0
        %1020 = vmatpush1.bf16.msra.mxu0 0
        %1021 = vmatprep.subr.bf16.mxu0 0
        %1022 = vmatpush1.bf16.msra.mxu0 0
        %1023 = vmatprep.subr.bf16.mxu0 0
        %1024 = vmatpush1.bf16.msra.mxu0 0
        %1025 = vmatprep.subr.bf16.mxu0 0
        %1026 = vmatpush1.bf16.msra.mxu0 0
        %1027 = vmatprep.subr.bf16.mxu0 0
        %1028 = vmatpush1.bf16.msra.mxu0 0
        %1029 = vmatprep.subr.bf16.mxu0 0
        %1030 = vmatpush1.bf16.msra.mxu0 0
        %1031 = vmatprep.subr.bf16.mxu0 0
        %1032 = vmatpush1.bf16.msra.mxu0 0
        %1033 = vmatprep.subr.bf16.mxu0 0
        %1034 = vmatpush1.bf16.msra.mxu0 %v985
        %1035 = vmatprep.subr.bf16.mxu0 0
        %1036 = vmatpush2.bf16.msra.mxu0 0
        %1037 = vmatprep.subr.bf16.mxu0 0
        %1038 = vmatpush2.bf16.msra.mxu0 0
        %1039 = vmatprep.subr.bf16.mxu0 0
        %1040 = vmatpush2.bf16.msra.mxu0 0
        %1041 = vmatprep.subr.bf16.mxu0 0
        %1042 = vmatpush2.bf16.msra.mxu0 0
        %1043 = vmatprep.subr.bf16.mxu0 0
        %1044 = vmatpush2.bf16.msra.mxu0 0
        %1045 = vmatprep.subr.bf16.mxu0 0
        %1046 = vmatpush2.bf16.msra.mxu0 0
        %1047 = vmatprep.subr.bf16.mxu0 0
        %1048 = vmatpush2.bf16.msra.mxu0 0
        %1049 = vmatprep.subr.bf16.mxu0 0
        %1050 = vmatpush2.bf16.msra.mxu0 0
        %1051 = vmatprep.mubr.bf16.mxu0 0
        %1052 = vmatmul.mubr.bf16.gmra.mxu0 %v1017
        %v1053 = vpop.f32.mrf.mxu0
        %v1054 = vadd.f32 0.0, %v1053
        %v1055 = vpop.f32.mrf.mxu0
        %v1056 = vpop.f32.mrf.mxu0
        %v1057 = vadd.f32 0.0, %v1056
        %v1058 = vpop.f32.mrf.mxu0
        %1059 = vdwg.mxu0
        %v1060 = vadd.f32 %v1006, %v1054
        %v1061 = vadd.f32 %v1006, %v1057
        %s1062 = scalar_lea.vmem [#allocation5], 8
        %v1063 = vld [vmem:[%s1062] sm:$0xf]
        %v1064 = vld [vmem:[%s1062 + $0x4] sm:$0xf]
        %v1067 = vunpack.c.l.b16 %v1063
        %v1068 = vunpack.c.l.b16 %v1064
        %v1069 = vpack.c.b16 %v1068, %v1067
        %v1071 = vsel %vm1015, %v1069, 0
        %1073 = vmatprep.subr.bf16.mxu0 0
        %1074 = vmatpush1.bf16.msra.mxu0 0
        %1075 = vmatprep.subr.bf16.mxu0 0
        %1076 = vmatpush1.bf16.msra.mxu0 0
        %1077 = vmatprep.subr.bf16.mxu0 0
        %1078 = vmatpush1.bf16.msra.mxu0 0
        %1079 = vmatprep.subr.bf16.mxu0 0
        %1080 = vmatpush1.bf16.msra.mxu0 0
        %1081 = vmatprep.subr.bf16.mxu0 0
        %1082 = vmatpush1.bf16.msra.mxu0 0
        %1083 = vmatprep.subr.bf16.mxu0 0
        %1084 = vmatpush1.bf16.msra.mxu0 0
        %1085 = vmatprep.subr.bf16.mxu0 0
        %1086 = vmatpush1.bf16.msra.mxu0 0
        %1087 = vmatprep.subr.bf16.mxu0 0
        %1088 = vmatpush1.bf16.msra.mxu0 %v986
        %1089 = vmatprep.subr.bf16.mxu0 0
        %1090 = vmatpush2.bf16.msra.mxu0 0
        %1091 = vmatprep.subr.bf16.mxu0 0
        %1092 = vmatpush2.bf16.msra.mxu0 0
        %1093 = vmatprep.subr.bf16.mxu0 0
        %1094 = vmatpush2.bf16.msra.mxu0 0
        %1095 = vmatprep.subr.bf16.mxu0 0
        %1096 = vmatpush2.bf16.msra.mxu0 0
        %1097 = vmatprep.subr.bf16.mxu0 0
        %1098 = vmatpush2.bf16.msra.mxu0 0
        %1099 = vmatprep.subr.bf16.mxu0 0
        %1100 = vmatpush2.bf16.msra.mxu0 0
        %1101 = vmatprep.subr.bf16.mxu0 0
        %1102 = vmatpush2.bf16.msra.mxu0 0
        %1103 = vmatprep.subr.bf16.mxu0 0
        %1104 = vmatpush2.bf16.msra.mxu0 0
        %1105 = vmatprep.mubr.bf16.mxu0 0
        %1106 = vmatmul.mubr.bf16.gmra.mxu0 %v1071
        %v1107 = vpop.f32.mrf.mxu0
        %v1108 = vadd.f32 0.0, %v1107
        %v1109 = vpop.f32.mrf.mxu0
        %v1110 = vpop.f32.mrf.mxu0
        %v1111 = vadd.f32 0.0, %v1110
        %v1112 = vpop.f32.mrf.mxu0
        %1113 = vdwg.mxu0
        %v1114 = vadd.f32 %v1060, %v1108
        %v1115 = vadd.f32 %v1061, %v1111
        %s1116 = scalar_lea.vmem [#allocation5], 16
        %v1117 = vld [vmem:[%s1116] sm:$0xf]
        %v1118 = vld [vmem:[%s1116 + $0x4] sm:$0xf]
        %v1121 = vunpack.c.l.b16 %v1117
        %v1122 = vunpack.c.l.b16 %v1118
        %v1123 = vpack.c.b16 %v1122, %v1121
        %v1125 = vsel %vm1015, %v1123, 0
        %1127 = vmatprep.subr.bf16.mxu0 0
        %1128 = vmatpush1.bf16.msra.mxu0 0
        %1129 = vmatprep.subr.bf16.mxu0 0
        %1130 = vmatpush1.bf16.msra.mxu0 0
        %1131 = vmatprep.subr.bf16.mxu0 0
        %1132 = vmatpush1.bf16.msra.mxu0 0
        %1133 = vmatprep.subr.bf16.mxu0 0
        %1134 = vmatpush1.bf16.msra.mxu0 0
        %1135 = vmatprep.subr.bf16.mxu0 0
        %1136 = vmatpush1.bf16.msra.mxu0 0
        %1137 = vmatprep.subr.bf16.mxu0 0
        %1138 = vmatpush1.bf16.msra.mxu0 0
        %1139 = vmatprep.subr.bf16.mxu0 0
        %1140 = vmatpush1.bf16.msra.mxu0 0
        %1141 = vmatprep.subr.bf16.mxu0 0
        %1142 = vmatpush1.bf16.msra.mxu0 %v987
        %1143 = vmatprep.subr.bf16.mxu0 0
        %1144 = vmatpush2.bf16.msra.mxu0 0
        %1145 = vmatprep.subr.bf16.mxu0 0
        %1146 = vmatpush2.bf16.msra.mxu0 0
        %1147 = vmatprep.subr.bf16.mxu0 0
        %1148 = vmatpush2.bf16.msra.mxu0 0
        %1149 = vmatprep.subr.bf16.mxu0 0
        %1150 = vmatpush2.bf16.msra.mxu0 0
        %1151 = vmatprep.subr.bf16.mxu0 0
        %1152 = vmatpush2.bf16.msra.mxu0 0
        %1153 = vmatprep.subr.bf16.mxu0 0
        %1154 = vmatpush2.bf16.msra.mxu0 0
        %1155 = vmatprep.subr.bf16.mxu0 0
        %1156 = vmatpush2.bf16.msra.mxu0 0
        %1157 = vmatprep.subr.bf16.mxu0 0
        %1158 = vmatpush2.bf16.msra.mxu0 0
        %1159 = vmatprep.mubr.bf16.mxu0 0
        %1160 = vmatmul.mubr.bf16.gmra.mxu0 %v1125
        %v1161 = vpop.f32.mrf.mxu0
        %v1162 = vadd.f32 0.0, %v1161
        %v1163 = vpop.f32.mrf.mxu0
        %v1164 = vpop.f32.mrf.mxu0
        %v1165 = vadd.f32 0.0, %v1164
        %v1166 = vpop.f32.mrf.mxu0
        %1167 = vdwg.mxu0
        %v1168 = vadd.f32 %v1114, %v1162
        %v1169 = vadd.f32 %v1115, %v1165
        %s1170 = scalar_lea.vmem [#allocation5], 24
        %v1171 = vld [vmem:[%s1170] sm:$0xf]
        %v1172 = vld [vmem:[%s1170 + $0x4] sm:$0xf]
        %v1175 = vunpack.c.l.b16 %v1171
        %v1176 = vunpack.c.l.b16 %v1172
        %v1177 = vpack.c.b16 %v1176, %v1175
        %v1179 = vsel %vm1015, %v1177, 0
        %1181 = vmatprep.subr.bf16.mxu0 0
        %1182 = vmatpush1.bf16.msra.mxu0 0
        %1183 = vmatprep.subr.bf16.mxu0 0
        %1184 = vmatpush1.bf16.msra.mxu0 0
        %1185 = vmatprep.subr.bf16.mxu0 0
        %1186 = vmatpush1.bf16.msra.mxu0 0
        %1187 = vmatprep.subr.bf16.mxu0 0
        %1188 = vmatpush1.bf16.msra.mxu0 0
        %1189 = vmatprep.subr.bf16.mxu0 0
        %1190 = vmatpush1.bf16.msra.mxu0 0
        %1191 = vmatprep.subr.bf16.mxu0 0
        %1192 = vmatpush1.bf16.msra.mxu0 0
        %1193 = vmatprep.subr.bf16.mxu0 0
        %1194 = vmatpush1.bf16.msra.mxu0 0
        %1195 = vmatprep.subr.bf16.mxu0 0
        %1196 = vmatpush1.bf16.msra.mxu0 %v988
        %1197 = vmatprep.subr.bf16.mxu0 0
        %1198 = vmatpush2.bf16.msra.mxu0 0
        %1199 = vmatprep.subr.bf16.mxu0 0
        %1200 = vmatpush2.bf16.msra.mxu0 0
        %1201 = vmatprep.subr.bf16.mxu0 0
        %1202 = vmatpush2.bf16.msra.mxu0 0
        %1203 = vmatprep.subr.bf16.mxu0 0
        %1204 = vmatpush2.bf16.msra.mxu0 0
        %1205 = vmatprep.subr.bf16.mxu0 0
        %1206 = vmatpush2.bf16.msra.mxu0 0
        %1207 = vmatprep.subr.bf16.mxu0 0
        %1208 = vmatpush2.bf16.msra.mxu0 0
        %1209 = vmatprep.subr.bf16.mxu0 0
        %1210 = vmatpush2.bf16.msra.mxu0 0
        %1211 = vmatprep.subr.bf16.mxu0 0
        %1212 = vmatpush2.bf16.msra.mxu0 0
        %1213 = vmatprep.mubr.bf16.mxu0 0
        %1214 = vmatmul.mubr.bf16.gmra.mxu0 %v1179
        %v1215 = vpop.f32.mrf.mxu0
        %v1216 = vadd.f32 0.0, %v1215
        %v1217 = vpop.f32.mrf.mxu0
        %v1218 = vpop.f32.mrf.mxu0
        %v1219 = vadd.f32 0.0, %v1218
        %v1220 = vpop.f32.mrf.mxu0
        %1221 = vdwg.mxu0
        %v1222 = vadd.f32 %v1168, %v1216
        %v1223 = vadd.f32 %v1169, %v1219
        %s1224 = scalar_lea.vmem [#allocation5], 32
        %v1225 = vld [vmem:[%s1224] sm:$0xf]
        %v1226 = vld [vmem:[%s1224 + $0x4] sm:$0xf]
        %v1229 = vunpack.c.l.b16 %v1225
        %v1230 = vunpack.c.l.b16 %v1226
        %v1231 = vpack.c.b16 %v1230, %v1229
        %v1233 = vsel %vm1015, %v1231, 0
        %1235 = vmatprep.subr.bf16.mxu0 0
        %1236 = vmatpush1.bf16.msra.mxu0 0
        %1237 = vmatprep.subr.bf16.mxu0 0
        %1238 = vmatpush1.bf16.msra.mxu0 0
        %1239 = vmatprep.subr.bf16.mxu0 0
        %1240 = vmatpush1.bf16.msra.mxu0 0
        %1241 = vmatprep.subr.bf16.mxu0 0
        %1242 = vmatpush1.bf16.msra.mxu0 0
        %1243 = vmatprep.subr.bf16.mxu0 0
        %1244 = vmatpush1.bf16.msra.mxu0 0
        %1245 = vmatprep.subr.bf16.mxu0 0
        %1246 = vmatpush1.bf16.msra.mxu0 0
        %1247 = vmatprep.subr.bf16.mxu0 0
        %1248 = vmatpush1.bf16.msra.mxu0 0
        %1249 = vmatprep.subr.bf16.mxu0 0
        %1250 = vmatpush1.bf16.msra.mxu0 %v989
        %1251 = vmatprep.subr.bf16.mxu0 0
        %1252 = vmatpush2.bf16.msra.mxu0 0
        %1253 = vmatprep.subr.bf16.mxu0 0
        %1254 = vmatpush2.bf16.msra.mxu0 0
        %1255 = vmatprep.subr.bf16.mxu0 0
        %1256 = vmatpush2.bf16.msra.mxu0 0
        %1257 = vmatprep.subr.bf16.mxu0 0
        %1258 = vmatpush2.bf16.msra.mxu0 0
        %1259 = vmatprep.subr.bf16.mxu0 0
        %1260 = vmatpush2.bf16.msra.mxu0 0
        %1261 = vmatprep.subr.bf16.mxu0 0
        %1262 = vmatpush2.bf16.msra.mxu0 0
        %1263 = vmatprep.subr.bf16.mxu0 0
        %1264 = vmatpush2.bf16.msra.mxu0 0
        %1265 = vmatprep.subr.bf16.mxu0 0
        %1266 = vmatpush2.bf16.msra.mxu0 0
        %1267 = vmatprep.mubr.bf16.mxu0 0
        %1268 = vmatmul.mubr.bf16.gmra.mxu0 %v1233
        %v1269 = vpop.f32.mrf.mxu0
        %v1270 = vadd.f32 0.0, %v1269
        %v1271 = vpop.f32.mrf.mxu0
        %v1272 = vpop.f32.mrf.mxu0
        %v1273 = vadd.f32 0.0, %v1272
        %v1274 = vpop.f32.mrf.mxu0
        %1275 = vdwg.mxu0
        %v1276 = vadd.f32 %v1222, %v1270
        %v1277 = vadd.f32 %v1223, %v1273
        %s1278 = scalar_lea.vmem [#allocation5], 40
        %v1279 = vld [vmem:[%s1278] sm:$0xf]
        %v1280 = vld [vmem:[%s1278 + $0x4] sm:$0xf]
        %v1283 = vunpack.c.l.b16 %v1279
        %v1284 = vunpack.c.l.b16 %v1280
        %v1285 = vpack.c.b16 %v1284, %v1283
        %v1287 = vsel %vm1015, %v1285, 0
        %1289 = vmatprep.subr.bf16.mxu0 0
        %1290 = vmatpush1.bf16.msra.mxu0 0
        %1291 = vmatprep.subr.bf16.mxu0 0
        %1292 = vmatpush1.bf16.msra.mxu0 0
        %1293 = vmatprep.subr.bf16.mxu0 0
        %1294 = vmatpush1.bf16.msra.mxu0 0
        %1295 = vmatprep.subr.bf16.mxu0 0
        %1296 = vmatpush1.bf16.msra.mxu0 0
        %1297 = vmatprep.subr.bf16.mxu0 0
        %1298 = vmatpush1.bf16.msra.mxu0 0
        %1299 = vmatprep.subr.bf16.mxu0 0
        %1300 = vmatpush1.bf16.msra.mxu0 0
        %1301 = vmatprep.subr.bf16.mxu0 0
        %1302 = vmatpush1.bf16.msra.mxu0 0
        %1303 = vmatprep.subr.bf16.mxu0 0
        %1304 = vmatpush1.bf16.msra.mxu0 %v990
        %1305 = vmatprep.subr.bf16.mxu0 0
        %1306 = vmatpush2.bf16.msra.mxu0 0
        %1307 = vmatprep.subr.bf16.mxu0 0
        %1308 = vmatpush2.bf16.msra.mxu0 0
        %1309 = vmatprep.subr.bf16.mxu0 0
        %1310 = vmatpush2.bf16.msra.mxu0 0
        %1311 = vmatprep.subr.bf16.mxu0 0
        %1312 = vmatpush2.bf16.msra.mxu0 0
        %1313 = vmatprep.subr.bf16.mxu0 0
        %1314 = vmatpush2.bf16.msra.mxu0 0
        %1315 = vmatprep.subr.bf16.mxu0 0
        %1316 = vmatpush2.bf16.msra.mxu0 0
        %1317 = vmatprep.subr.bf16.mxu0 0
        %1318 = vmatpush2.bf16.msra.mxu0 0
        %1319 = vmatprep.subr.bf16.mxu0 0
        %1320 = vmatpush2.bf16.msra.mxu0 0
        %1321 = vmatprep.mubr.bf16.mxu0 0
        %1322 = vmatmul.mubr.bf16.gmra.mxu0 %v1287
        %v1323 = vpop.f32.mrf.mxu0
        %v1324 = vadd.f32 0.0, %v1323
        %v1325 = vpop.f32.mrf.mxu0
        %v1326 = vpop.f32.mrf.mxu0
        %v1327 = vadd.f32 0.0, %v1326
        %v1328 = vpop.f32.mrf.mxu0
        %1329 = vdwg.mxu0
        %v1330 = vadd.f32 %v1276, %v1324
        %v1331 = vadd.f32 %v1277, %v1327
        %s1332 = scalar_lea.vmem [#allocation5], 48
        %v1333 = vld [vmem:[%s1332] sm:$0xf]
        %v1334 = vld [vmem:[%s1332 + $0x4] sm:$0xf]
        %v1337 = vunpack.c.l.b16 %v1333
        %v1338 = vunpack.c.l.b16 %v1334
        %v1339 = vpack.c.b16 %v1338, %v1337
        %v1341 = vsel %vm1015, %v1339, 0
        %1343 = vmatprep.subr.bf16.mxu0 0
        %1344 = vmatpush1.bf16.msra.mxu0 0
        %1345 = vmatprep.subr.bf16.mxu0 0
        %1346 = vmatpush1.bf16.msra.mxu0 0
        %1347 = vmatprep.subr.bf16.mxu0 0
        %1348 = vmatpush1.bf16.msra.mxu0 0
        %1349 = vmatprep.subr.bf16.mxu0 0
        %1350 = vmatpush1.bf16.msra.mxu0 0
        %1351 = vmatprep.subr.bf16.mxu0 0
        %1352 = vmatpush1.bf16.msra.mxu0 0
        %1353 = vmatprep.subr.bf16.mxu0 0
        %1354 = vmatpush1.bf16.msra.mxu0 0
        %1355 = vmatprep.subr.bf16.mxu0 0
        %1356 = vmatpush1.bf16.msra.mxu0 0
        %1357 = vmatprep.subr.bf16.mxu0 0
        %1358 = vmatpush1.bf16.msra.mxu0 %v991
        %1359 = vmatprep.subr.bf16.mxu0 0
        %1360 = vmatpush2.bf16.msra.mxu0 0
        %1361 = vmatprep.subr.bf16.mxu0 0
        %1362 = vmatpush2.bf16.msra.mxu0 0
        %1363 = vmatprep.subr.bf16.mxu0 0
        %1364 = vmatpush2.bf16.msra.mxu0 0
        %1365 = vmatprep.subr.bf16.mxu0 0
        %1366 = vmatpush2.bf16.msra.mxu0 0
        %1367 = vmatprep.subr.bf16.mxu0 0
        %1368 = vmatpush2.bf16.msra.mxu0 0
        %1369 = vmatprep.subr.bf16.mxu0 0
        %1370 = vmatpush2.bf16.msra.mxu0 0
        %1371 = vmatprep.subr.bf16.mxu0 0
        %1372 = vmatpush2.bf16.msra.mxu0 0
        %1373 = vmatprep.subr.bf16.mxu0 0
        %1374 = vmatpush2.bf16.msra.mxu0 0
        %1375 = vmatprep.mubr.bf16.mxu0 0
        %1376 = vmatmul.mubr.bf16.gmra.mxu0 %v1341
        %v1377 = vpop.f32.mrf.mxu0
        %v1378 = vadd.f32 0.0, %v1377
        %v1379 = vpop.f32.mrf.mxu0
        %v1380 = vpop.f32.mrf.mxu0
        %v1381 = vadd.f32 0.0, %v1380
        %v1382 = vpop.f32.mrf.mxu0
        %1383 = vdwg.mxu0
        %v1384 = vadd.f32 %v1330, %v1378
        %v1385 = vadd.f32 %v1331, %v1381
        %s1386 = scalar_lea.vmem [#allocation5], 56
        %v1387 = vld [vmem:[%s1386] sm:$0xf]
        %v1388 = vld [vmem:[%s1386 + $0x4] sm:$0xf]
        %v1391 = vunpack.c.l.b16 %v1387
        %v1392 = vunpack.c.l.b16 %v1388
        %v1393 = vpack.c.b16 %v1392, %v1391
        %v1395 = vsel %vm1015, %v1393, 0
        %1397 = vmatprep.subr.bf16.mxu0 0
        %1398 = vmatpush1.bf16.msra.mxu0 0
        %1399 = vmatprep.subr.bf16.mxu0 0
        %1400 = vmatpush1.bf16.msra.mxu0 0
        %1401 = vmatprep.subr.bf16.mxu0 0
        %1402 = vmatpush1.bf16.msra.mxu0 0
        %1403 = vmatprep.subr.bf16.mxu0 0
        %1404 = vmatpush1.bf16.msra.mxu0 0
        %1405 = vmatprep.subr.bf16.mxu0 0
        %1406 = vmatpush1.bf16.msra.mxu0 0
        %1407 = vmatprep.subr.bf16.mxu0 0
        %1408 = vmatpush1.bf16.msra.mxu0 0
        %1409 = vmatprep.subr.bf16.mxu0 0
        %1410 = vmatpush1.bf16.msra.mxu0 0
        %1411 = vmatprep.subr.bf16.mxu0 0
        %1412 = vmatpush1.bf16.msra.mxu0 %v992
        %1413 = vmatprep.subr.bf16.mxu0 0
        %1414 = vmatpush2.bf16.msra.mxu0 0
        %1415 = vmatprep.subr.bf16.mxu0 0
        %1416 = vmatpush2.bf16.msra.mxu0 0
        %1417 = vmatprep.subr.bf16.mxu0 0
        %1418 = vmatpush2.bf16.msra.mxu0 0
        %1419 = vmatprep.subr.bf16.mxu0 0
        %1420 = vmatpush2.bf16.msra.mxu0 0
        %1421 = vmatprep.subr.bf16.mxu0 0
        %1422 = vmatpush2.bf16.msra.mxu0 0
        %1423 = vmatprep.subr.bf16.mxu0 0
        %1424 = vmatpush2.bf16.msra.mxu0 0
        %1425 = vmatprep.subr.bf16.mxu0 0
        %1426 = vmatpush2.bf16.msra.mxu0 0
        %1427 = vmatprep.subr.bf16.mxu0 0
        %1428 = vmatpush2.bf16.msra.mxu0 0
        %1429 = vmatprep.mubr.bf16.mxu0 0
        %1430 = vmatmul.mubr.bf16.gmra.mxu0 %v1395
        %v1431 = vpop.f32.mrf.mxu0
        %v1432 = vadd.f32 0.0, %v1431
        %v1433 = vpop.f32.mrf.mxu0
        %v1434 = vpop.f32.mrf.mxu0
        %v1435 = vadd.f32 0.0, %v1434
        %v1436 = vpop.f32.mrf.mxu0
        %1437 = vdwg.mxu0
        %v1438 = vadd.f32 %v1384, %v1432
        %v1439 = vadd.f32 %v1385, %v1435
        %s1440 = scalar_lea.vmem [#allocation5], 64
        %v1441 = vld [vmem:[%s1440] sm:$0xf]
        %v1442 = vld [vmem:[%s1440 + $0x4] sm:$0xf]
        %v1445 = vunpack.c.l.b16 %v1441
        %v1446 = vunpack.c.l.b16 %v1442
        %v1447 = vpack.c.b16 %v1446, %v1445
        %v1449 = vsel %vm1015, %v1447, 0
        %1451 = vmatprep.subr.bf16.mxu0 0
        %1452 = vmatpush1.bf16.msra.mxu0 0
        %1453 = vmatprep.subr.bf16.mxu0 0
        %1454 = vmatpush1.bf16.msra.mxu0 0
        %1455 = vmatprep.subr.bf16.mxu0 0
        %1456 = vmatpush1.bf16.msra.mxu0 0
        %1457 = vmatprep.subr.bf16.mxu0 0
        %1458 = vmatpush1.bf16.msra.mxu0 0
        %1459 = vmatprep.subr.bf16.mxu0 0
        %1460 = vmatpush1.bf16.msra.mxu0 0
        %1461 = vmatprep.subr.bf16.mxu0 0
        %1462 = vmatpush1.bf16.msra.mxu0 0
        %1463 = vmatprep.subr.bf16.mxu0 0
        %1464 = vmatpush1.bf16.msra.mxu0 0
        %1465 = vmatprep.subr.bf16.mxu0 0
        %1466 = vmatpush1.bf16.msra.mxu0 %v993
        %1467 = vmatprep.subr.bf16.mxu0 0
        %1468 = vmatpush2.bf16.msra.mxu0 0
        %1469 = vmatprep.subr.bf16.mxu0 0
        %1470 = vmatpush2.bf16.msra.mxu0 0
        %1471 = vmatprep.subr.bf16.mxu0 0
        %1472 = vmatpush2.bf16.msra.mxu0 0
        %1473 = vmatprep.subr.bf16.mxu0 0
        %1474 = vmatpush2.bf16.msra.mxu0 0
        %1475 = vmatprep.subr.bf16.mxu0 0
        %1476 = vmatpush2.bf16.msra.mxu0 0
        %1477 = vmatprep.subr.bf16.mxu0 0
        %1478 = vmatpush2.bf16.msra.mxu0 0
        %1479 = vmatprep.subr.bf16.mxu0 0
        %1480 = vmatpush2.bf16.msra.mxu0 0
        %1481 = vmatprep.subr.bf16.mxu0 0
        %1482 = vmatpush2.bf16.msra.mxu0 0
        %1483 = vmatprep.mubr.bf16.mxu0 0
        %1484 = vmatmul.mubr.bf16.gmra.mxu0 %v1449
        %v1485 = vpop.f32.mrf.mxu0
        %v1486 = vadd.f32 0.0, %v1485
        %v1487 = vpop.f32.mrf.mxu0
        %v1488 = vpop.f32.mrf.mxu0
        %v1489 = vadd.f32 0.0, %v1488
        %v1490 = vpop.f32.mrf.mxu0
        %1491 = vdwg.mxu0
        %v1492 = vadd.f32 %v1438, %v1486
        %v1493 = vadd.f32 %v1439, %v1489
        %s1494 = scalar_lea.vmem [#allocation5], 72
        %v1495 = vld [vmem:[%s1494] sm:$0xf]
        %v1496 = vld [vmem:[%s1494 + $0x4] sm:$0xf]
        %v1499 = vunpack.c.l.b16 %v1495
        %v1500 = vunpack.c.l.b16 %v1496
        %v1501 = vpack.c.b16 %v1500, %v1499
        %v1503 = vsel %vm1015, %v1501, 0
        %1505 = vmatprep.subr.bf16.mxu0 0
        %1506 = vmatpush1.bf16.msra.mxu0 0
        %1507 = vmatprep.subr.bf16.mxu0 0
        %1508 = vmatpush1.bf16.msra.mxu0 0
        %1509 = vmatprep.subr.bf16.mxu0 0
        %1510 = vmatpush1.bf16.msra.mxu0 0
        %1511 = vmatprep.subr.bf16.mxu0 0
        %1512 = vmatpush1.bf16.msra.mxu0 0
        %1513 = vmatprep.subr.bf16.mxu0 0
        %1514 = vmatpush1.bf16.msra.mxu0 0
        %1515 = vmatprep.subr.bf16.mxu0 0
        %1516 = vmatpush1.bf16.msra.mxu0 0
        %1517 = vmatprep.subr.bf16.mxu0 0
        %1518 = vmatpush1.bf16.msra.mxu0 0
        %1519 = vmatprep.subr.bf16.mxu0 0
        %1520 = vmatpush1.bf16.msra.mxu0 %v994
        %1521 = vmatprep.subr.bf16.mxu0 0
        %1522 = vmatpush2.bf16.msra.mxu0 0
        %1523 = vmatprep.subr.bf16.mxu0 0
        %1524 = vmatpush2.bf16.msra.mxu0 0
        %1525 = vmatprep.subr.bf16.mxu0 0
        %1526 = vmatpush2.bf16.msra.mxu0 0
        %1527 = vmatprep.subr.bf16.mxu0 0
        %1528 = vmatpush2.bf16.msra.mxu0 0
        %1529 = vmatprep.subr.bf16.mxu0 0
        %1530 = vmatpush2.bf16.msra.mxu0 0
        %1531 = vmatprep.subr.bf16.mxu0 0
        %1532 = vmatpush2.bf16.msra.mxu0 0
        %1533 = vmatprep.subr.bf16.mxu0 0
        %1534 = vmatpush2.bf16.msra.mxu0 0
        %1535 = vmatprep.subr.bf16.mxu0 0
        %1536 = vmatpush2.bf16.msra.mxu0 0
        %1537 = vmatprep.mubr.bf16.mxu0 0
        %1538 = vmatmul.mubr.bf16.gmra.mxu0 %v1503
        %v1539 = vpop.f32.mrf.mxu0
        %v1540 = vadd.f32 0.0, %v1539
        %v1541 = vpop.f32.mrf.mxu0
        %v1542 = vpop.f32.mrf.mxu0
        %v1543 = vadd.f32 0.0, %v1542
        %v1544 = vpop.f32.mrf.mxu0
        %1545 = vdwg.mxu0
        %v1546 = vadd.f32 %v1492, %v1540
        %v1547 = vadd.f32 %v1493, %v1543
        %s1548 = scalar_lea.vmem [#allocation5], 80
        %v1549 = vld [vmem:[%s1548] sm:$0xf]
        %v1550 = vld [vmem:[%s1548 + $0x4] sm:$0xf]
        %v1553 = vunpack.c.l.b16 %v1549
        %v1554 = vunpack.c.l.b16 %v1550
        %v1555 = vpack.c.b16 %v1554, %v1553
        %v1557 = vsel %vm1015, %v1555, 0
        %1559 = vmatprep.subr.bf16.mxu0 0
        %1560 = vmatpush1.bf16.msra.mxu0 0
        %1561 = vmatprep.subr.bf16.mxu0 0
        %1562 = vmatpush1.bf16.msra.mxu0 0
        %1563 = vmatprep.subr.bf16.mxu0 0
        %1564 = vmatpush1.bf16.msra.mxu0 0
        %1565 = vmatprep.subr.bf16.mxu0 0
        %1566 = vmatpush1.bf16.msra.mxu0 0
        %1567 = vmatprep.subr.bf16.mxu0 0
        %1568 = vmatpush1.bf16.msra.mxu0 0
        %1569 = vmatprep.subr.bf16.mxu0 0
        %1570 = vmatpush1.bf16.msra.mxu0 0
        %1571 = vmatprep.subr.bf16.mxu0 0
        %1572 = vmatpush1.bf16.msra.mxu0 0
        %1573 = vmatprep.subr.bf16.mxu0 0
        %1574 = vmatpush1.bf16.msra.mxu0 %v995
        %1575 = vmatprep.subr.bf16.mxu0 0
        %1576 = vmatpush2.bf16.msra.mxu0 0
        %1577 = vmatprep.subr.bf16.mxu0 0
        %1578 = vmatpush2.bf16.msra.mxu0 0
        %1579 = vmatprep.subr.bf16.mxu0 0
        %1580 = vmatpush2.bf16.msra.mxu0 0
        %1581 = vmatprep.subr.bf16.mxu0 0
        %1582 = vmatpush2.bf16.msra.mxu0 0
        %1583 = vmatprep.subr.bf16.mxu0 0
        %1584 = vmatpush2.bf16.msra.mxu0 0
        %1585 = vmatprep.subr.bf16.mxu0 0
        %1586 = vmatpush2.bf16.msra.mxu0 0
        %1587 = vmatprep.subr.bf16.mxu0 0
        %1588 = vmatpush2.bf16.msra.mxu0 0
        %1589 = vmatprep.subr.bf16.mxu0 0
        %1590 = vmatpush2.bf16.msra.mxu0 0
        %1591 = vmatprep.mubr.bf16.mxu0 0
        %1592 = vmatmul.mubr.bf16.gmra.mxu0 %v1557
        %v1593 = vpop.f32.mrf.mxu0
        %v1594 = vadd.f32 0.0, %v1593
        %v1595 = vpop.f32.mrf.mxu0
        %v1596 = vpop.f32.mrf.mxu0
        %v1597 = vadd.f32 0.0, %v1596
        %v1598 = vpop.f32.mrf.mxu0
        %1599 = vdwg.mxu0
        %v1600 = vadd.f32 %v1546, %v1594
        %v1601 = vadd.f32 %v1547, %v1597
        %s1602 = scalar_lea.vmem [#allocation5], 88
        %v1603 = vld [vmem:[%s1602] sm:$0xf]
        %v1604 = vld [vmem:[%s1602 + $0x4] sm:$0xf]
        %v1607 = vunpack.c.l.b16 %v1603
        %v1608 = vunpack.c.l.b16 %v1604
        %v1609 = vpack.c.b16 %v1608, %v1607
        %v1611 = vsel %vm1015, %v1609, 0
        %1613 = vmatprep.subr.bf16.mxu0 0
        %1614 = vmatpush1.bf16.msra.mxu0 0
        %1615 = vmatprep.subr.bf16.mxu0 0
        %1616 = vmatpush1.bf16.msra.mxu0 0
        %1617 = vmatprep.subr.bf16.mxu0 0
        %1618 = vmatpush1.bf16.msra.mxu0 0
        %1619 = vmatprep.subr.bf16.mxu0 0
        %1620 = vmatpush1.bf16.msra.mxu0 0
        %1621 = vmatprep.subr.bf16.mxu0 0
        %1622 = vmatpush1.bf16.msra.mxu0 0
        %1623 = vmatprep.subr.bf16.mxu0 0
        %1624 = vmatpush1.bf16.msra.mxu0 0
        %1625 = vmatprep.subr.bf16.mxu0 0
        %1626 = vmatpush1.bf16.msra.mxu0 0
        %1627 = vmatprep.subr.bf16.mxu0 0
        %1628 = vmatpush1.bf16.msra.mxu0 %v996
        %1629 = vmatprep.subr.bf16.mxu0 0
        %1630 = vmatpush2.bf16.msra.mxu0 0
        %1631 = vmatprep.subr.bf16.mxu0 0
        %1632 = vmatpush2.bf16.msra.mxu0 0
        %1633 = vmatprep.subr.bf16.mxu0 0
        %1634 = vmatpush2.bf16.msra.mxu0 0
        %1635 = vmatprep.subr.bf16.mxu0 0
        %1636 = vmatpush2.bf16.msra.mxu0 0
        %1637 = vmatprep.subr.bf16.mxu0 0
        %1638 = vmatpush2.bf16.msra.mxu0 0
        %1639 = vmatprep.subr.bf16.mxu0 0
        %1640 = vmatpush2.bf16.msra.mxu0 0
        %1641 = vmatprep.subr.bf16.mxu0 0
        %1642 = vmatpush2.bf16.msra.mxu0 0
        %1643 = vmatprep.subr.bf16.mxu0 0
        %1644 = vmatpush2.bf16.msra.mxu0 0
        %1645 = vmatprep.mubr.bf16.mxu0 0
        %1646 = vmatmul.mubr.bf16.gmra.mxu0 %v1611
        %v1647 = vpop.f32.mrf.mxu0
        %v1648 = vadd.f32 0.0, %v1647
        %v1649 = vpop.f32.mrf.mxu0
        %v1650 = vpop.f32.mrf.mxu0
        %v1651 = vadd.f32 0.0, %v1650
        %v1652 = vpop.f32.mrf.mxu0
        %1653 = vdwg.mxu0
        %v1654 = vadd.f32 %v1600, %v1648
        %v1655 = vadd.f32 %v1601, %v1651
        %s1656 = scalar_lea.vmem [#allocation5], 96
        %v1657 = vld [vmem:[%s1656] sm:$0xf]
        %v1658 = vld [vmem:[%s1656 + $0x4] sm:$0xf]
        %v1661 = vunpack.c.l.b16 %v1657
        %v1662 = vunpack.c.l.b16 %v1658
        %v1663 = vpack.c.b16 %v1662, %v1661
        %v1665 = vsel %vm1015, %v1663, 0
        %1667 = vmatprep.subr.bf16.mxu0 0
        %1668 = vmatpush1.bf16.msra.mxu0 0
        %1669 = vmatprep.subr.bf16.mxu0 0
        %1670 = vmatpush1.bf16.msra.mxu0 0
        %1671 = vmatprep.subr.bf16.mxu0 0
        %1672 = vmatpush1.bf16.msra.mxu0 0
        %1673 = vmatprep.subr.bf16.mxu0 0
        %1674 = vmatpush1.bf16.msra.mxu0 0
        %1675 = vmatprep.subr.bf16.mxu0 0
        %1676 = vmatpush1.bf16.msra.mxu0 0
        %1677 = vmatprep.subr.bf16.mxu0 0
        %1678 = vmatpush1.bf16.msra.mxu0 0
        %1679 = vmatprep.subr.bf16.mxu0 0
        %1680 = vmatpush1.bf16.msra.mxu0 0
        %1681 = vmatprep.subr.bf16.mxu0 0
        %1682 = vmatpush1.bf16.msra.mxu0 %v997
        %1683 = vmatprep.subr.bf16.mxu0 0
        %1684 = vmatpush2.bf16.msra.mxu0 0
        %1685 = vmatprep.subr.bf16.mxu0 0
        %1686 = vmatpush2.bf16.msra.mxu0 0
        %1687 = vmatprep.subr.bf16.mxu0 0
        %1688 = vmatpush2.bf16.msra.mxu0 0
        %1689 = vmatprep.subr.bf16.mxu0 0
        %1690 = vmatpush2.bf16.msra.mxu0 0
        %1691 = vmatprep.subr.bf16.mxu0 0
        %1692 = vmatpush2.bf16.msra.mxu0 0
        %1693 = vmatprep.subr.bf16.mxu0 0
        %1694 = vmatpush2.bf16.msra.mxu0 0
        %1695 = vmatprep.subr.bf16.mxu0 0
        %1696 = vmatpush2.bf16.msra.mxu0 0
        %1697 = vmatprep.subr.bf16.mxu0 0
        %1698 = vmatpush2.bf16.msra.mxu0 0
        %1699 = vmatprep.mubr.bf16.mxu0 0
        %1700 = vmatmul.mubr.bf16.gmra.mxu0 %v1665
        %v1701 = vpop.f32.mrf.mxu0
        %v1702 = vadd.f32 0.0, %v1701
        %v1703 = vpop.f32.mrf.mxu0
        %v1704 = vpop.f32.mrf.mxu0
        %v1705 = vadd.f32 0.0, %v1704
        %v1706 = vpop.f32.mrf.mxu0
        %1707 = vdwg.mxu0
        %v1708 = vadd.f32 %v1654, %v1702
        %v1709 = vadd.f32 %v1655, %v1705
        %s1710 = scalar_lea.vmem [#allocation5], 104
        %v1711 = vld [vmem:[%s1710] sm:$0xf]
        %v1712 = vld [vmem:[%s1710 + $0x4] sm:$0xf]
        %v1715 = vunpack.c.l.b16 %v1711
        %v1716 = vunpack.c.l.b16 %v1712
        %v1717 = vpack.c.b16 %v1716, %v1715
        %v1719 = vsel %vm1015, %v1717, 0
        %1721 = vmatprep.subr.bf16.mxu0 0
        %1722 = vmatpush1.bf16.msra.mxu0 0
        %1723 = vmatprep.subr.bf16.mxu0 0
        %1724 = vmatpush1.bf16.msra.mxu0 0
        %1725 = vmatprep.subr.bf16.mxu0 0
        %1726 = vmatpush1.bf16.msra.mxu0 0
        %1727 = vmatprep.subr.bf16.mxu0 0
        %1728 = vmatpush1.bf16.msra.mxu0 0
        %1729 = vmatprep.subr.bf16.mxu0 0
        %1730 = vmatpush1.bf16.msra.mxu0 0
        %1731 = vmatprep.subr.bf16.mxu0 0
        %1732 = vmatpush1.bf16.msra.mxu0 0
        %1733 = vmatprep.subr.bf16.mxu0 0
        %1734 = vmatpush1.bf16.msra.mxu0 0
        %1735 = vmatprep.subr.bf16.mxu0 0
        %1736 = vmatpush1.bf16.msra.mxu0 %v998
        %1737 = vmatprep.subr.bf16.mxu0 0
        %1738 = vmatpush2.bf16.msra.mxu0 0
        %1739 = vmatprep.subr.bf16.mxu0 0
        %1740 = vmatpush2.bf16.msra.mxu0 0
        %1741 = vmatprep.subr.bf16.mxu0 0
        %1742 = vmatpush2.bf16.msra.mxu0 0
        %1743 = vmatprep.subr.bf16.mxu0 0
        %1744 = vmatpush2.bf16.msra.mxu0 0
        %1745 = vmatprep.subr.bf16.mxu0 0
        %1746 = vmatpush2.bf16.msra.mxu0 0
        %1747 = vmatprep.subr.bf16.mxu0 0
        %1748 = vmatpush2.bf16.msra.mxu0 0
        %1749 = vmatprep.subr.bf16.mxu0 0
        %1750 = vmatpush2.bf16.msra.mxu0 0
        %1751 = vmatprep.subr.bf16.mxu0 0
        %1752 = vmatpush2.bf16.msra.mxu0 0
        %1753 = vmatprep.mubr.bf16.mxu0 0
        %1754 = vmatmul.mubr.bf16.gmra.mxu0 %v1719
        %v1755 = vpop.f32.mrf.mxu0
        %v1756 = vadd.f32 0.0, %v1755
        %v1757 = vpop.f32.mrf.mxu0
        %v1758 = vpop.f32.mrf.mxu0
        %v1759 = vadd.f32 0.0, %v1758
        %v1760 = vpop.f32.mrf.mxu0
        %1761 = vdwg.mxu0
        %v1762 = vadd.f32 %v1708, %v1756
        %v1763 = vadd.f32 %v1709, %v1759
        %s1764 = scalar_lea.vmem [#allocation5], 112
        %v1765 = vld [vmem:[%s1764] sm:$0xf]
        %v1766 = vld [vmem:[%s1764 + $0x4] sm:$0xf]
        %v1769 = vunpack.c.l.b16 %v1765
        %v1770 = vunpack.c.l.b16 %v1766
        %v1771 = vpack.c.b16 %v1770, %v1769
        %v1773 = vsel %vm1015, %v1771, 0
        %1775 = vmatprep.subr.bf16.mxu0 0
        %1776 = vmatpush1.bf16.msra.mxu0 0
        %1777 = vmatprep.subr.bf16.mxu0 0
        %1778 = vmatpush1.bf16.msra.mxu0 0
        %1779 = vmatprep.subr.bf16.mxu0 0
        %1780 = vmatpush1.bf16.msra.mxu0 0
        %1781 = vmatprep.subr.bf16.mxu0 0
        %1782 = vmatpush1.bf16.msra.mxu0 0
        %1783 = vmatprep.subr.bf16.mxu0 0
        %1784 = vmatpush1.bf16.msra.mxu0 0
        %1785 = vmatprep.subr.bf16.mxu0 0
        %1786 = vmatpush1.bf16.msra.mxu0 0
        %1787 = vmatprep.subr.bf16.mxu0 0
        %1788 = vmatpush1.bf16.msra.mxu0 0
        %1789 = vmatprep.subr.bf16.mxu0 0
        %1790 = vmatpush1.bf16.msra.mxu0 %v999
        %1791 = vmatprep.subr.bf16.mxu0 0
        %1792 = vmatpush2.bf16.msra.mxu0 0
        %1793 = vmatprep.subr.bf16.mxu0 0
        %1794 = vmatpush2.bf16.msra.mxu0 0
        %1795 = vmatprep.subr.bf16.mxu0 0
        %1796 = vmatpush2.bf16.msra.mxu0 0
        %1797 = vmatprep.subr.bf16.mxu0 0
        %1798 = vmatpush2.bf16.msra.mxu0 0
        %1799 = vmatprep.subr.bf16.mxu0 0
        %1800 = vmatpush2.bf16.msra.mxu0 0
        %1801 = vmatprep.subr.bf16.mxu0 0
        %1802 = vmatpush2.bf16.msra.mxu0 0
        %1803 = vmatprep.subr.bf16.mxu0 0
        %1804 = vmatpush2.bf16.msra.mxu0 0
        %1805 = vmatprep.subr.bf16.mxu0 0
        %1806 = vmatpush2.bf16.msra.mxu0 0
        %1807 = vmatprep.mubr.bf16.mxu0 0
        %1808 = vmatmul.mubr.bf16.gmra.mxu0 %v1773
        %v1809 = vpop.f32.mrf.mxu0
        %v1810 = vadd.f32 0.0, %v1809
        %v1811 = vpop.f32.mrf.mxu0
        %v1812 = vpop.f32.mrf.mxu0
        %v1813 = vadd.f32 0.0, %v1812
        %v1814 = vpop.f32.mrf.mxu0
        %1815 = vdwg.mxu0
        %v1816 = vadd.f32 %v1762, %v1810
        %v1817 = vadd.f32 %v1763, %v1813
        %s1818 = scalar_lea.vmem [#allocation5], 120
        %v1819 = vld [vmem:[%s1818] sm:$0xf]
        %v1820 = vld [vmem:[%s1818 + $0x4] sm:$0xf]
        %v1823 = vunpack.c.l.b16 %v1819
        %v1824 = vunpack.c.l.b16 %v1820
        %v1825 = vpack.c.b16 %v1824, %v1823
        %v1827 = vsel %vm1015, %v1825, 0
        %1829 = vmatprep.subr.bf16.mxu0 0
        %1830 = vmatpush1.bf16.msra.mxu0 0
        %1831 = vmatprep.subr.bf16.mxu0 0
        %1832 = vmatpush1.bf16.msra.mxu0 0
        %1833 = vmatprep.subr.bf16.mxu0 0
        %1834 = vmatpush1.bf16.msra.mxu0 0
        %1835 = vmatprep.subr.bf16.mxu0 0
        %1836 = vmatpush1.bf16.msra.mxu0 0
        %1837 = vmatprep.subr.bf16.mxu0 0
        %1838 = vmatpush1.bf16.msra.mxu0 0
        %1839 = vmatprep.subr.bf16.mxu0 0
        %1840 = vmatpush1.bf16.msra.mxu0 0
        %1841 = vmatprep.subr.bf16.mxu0 0
        %1842 = vmatpush1.bf16.msra.mxu0 0
        %1843 = vmatprep.subr.bf16.mxu0 0
        %1844 = vmatpush1.bf16.msra.mxu0 %v1000
        %1845 = vmatprep.subr.bf16.mxu0 0
        %1846 = vmatpush2.bf16.msra.mxu0 0
        %1847 = vmatprep.subr.bf16.mxu0 0
        %1848 = vmatpush2.bf16.msra.mxu0 0
        %1849 = vmatprep.subr.bf16.mxu0 0
        %1850 = vmatpush2.bf16.msra.mxu0 0
        %1851 = vmatprep.subr.bf16.mxu0 0
        %1852 = vmatpush2.bf16.msra.mxu0 0
        %1853 = vmatprep.subr.bf16.mxu0 0
        %1854 = vmatpush2.bf16.msra.mxu0 0
        %1855 = vmatprep.subr.bf16.mxu0 0
        %1856 = vmatpush2.bf16.msra.mxu0 0
        %1857 = vmatprep.subr.bf16.mxu0 0
        %1858 = vmatpush2.bf16.msra.mxu0 0
        %1859 = vmatprep.subr.bf16.mxu0 0
        %1860 = vmatpush2.bf16.msra.mxu0 0
        %1861 = vmatprep.mubr.bf16.mxu0 0
        %1862 = vmatmul.mubr.bf16.gmra.mxu0 %v1827
        %v1863 = vpop.f32.mrf.mxu0
        %v1864 = vadd.f32 0.0, %v1863
        %v1865 = vpop.f32.mrf.mxu0
        %v1866 = vpop.f32.mrf.mxu0
        %v1867 = vadd.f32 0.0, %v1866
        %v1868 = vpop.f32.mrf.mxu0
        %1869 = vdwg.mxu0
        %v1870 = vadd.f32 %v1816, %v1864
        %v1871 = vadd.f32 %v1817, %v1867
        %1872 = vst [vmem:[%s244] sm:$0xff] %v1870
        %1873 = vst [vmem:[%s244 + $0x8] sm:$0xff] %v1871
        %s1874 = sand.u32 %s119, 1
        %s1875 = scalar_lea.sflag [#allocation4], %s1874
        %s1876 = sand.u32 %s119, 1
        %s1877 = smul.addr %s1876, 16
        %s1878 = scalar_lea.vmem [#allocation8], %s1877
        // Predicated region
        $region49: #{tpu_custom_call.1} parent=35 // pred_check
          %p1879 = pneg %p129
        $region50: #{tpu_custom_call.1} parent=35 // pred_check_branch
          %1881 = sbr.rel (%p1879) target = $region52
        $region51: #{tpu_custom_call.1} parent=35 // pred_region
          %s1883 = ssub.s32 256, 256
          %1884 = vsyncadd %s1875, %s1883
          %s1885 = smul.addr %s22, 2
          %s1886 = smul.addr %s1885, 128
          %s1887 = scalar_lea.hbm %s4, %s1886
          %s1888 = sshll.u32 %s1878, 4
          %s1889 = int_to_ptr.vmem [resolvable:$true] %s1888
          %1894 = dma.vmem_to_hbm [thread:$0]  %s1889, 256, %s1887, %s1875, 128, 128, 8
        $region52: #{tpu_custom_call.1} parent=35 // pred_fallthru
          _
      $region36: #{tpu_custom_call.1} parent=5 // pred_fallthru
        _
      %p1895 = scmp.le.s32.totalorder 2, %s17
      // Predicated region
      $region53: #{tpu_custom_call.1} parent=5 // pred_check
        %p1896 = pneg %p1895
      $region54: #{tpu_custom_call.1} parent=5 // pred_check_branch
        %1898 = sbr.rel (%p1896) target = $region56
      $region55: #{tpu_custom_call.1} parent=5 // pred_region
        %s1899 = ssub.s32 %s17, 2
        // Predicated region
        $region57: #{tpu_custom_call.1} parent=55 // pred_check
          %p1900 = pneg %p135
        $region58: #{tpu_custom_call.1} parent=55 // pred_check_branch
          %1902 = sbr.rel (%p1900) target = $region60
        $region59: #{tpu_custom_call.1} parent=55 // pred_region
          %s1903 = sand.u32 %s120, 1
          %s1904 = scalar_lea.sflag [#allocation4], %s1903
          %s1905 = sand.u32 %s120, 1
          %s1906 = smul.addr %s1905, 16
          %s1907 = scalar_lea.vmem [#allocation8], %s1906
          %1908 = dma.done %s1904, 256
        $region60: #{tpu_custom_call.1} parent=55 // pred_fallthru
          _
      $region56: #{tpu_custom_call.1} parent=5 // pred_fallthru
        _
    $region6: #{tpu_custom_call.1} parent=1 // loop_footer
      %s21 = sadd.s32 1, %s17
    $region7: #{tpu_custom_call.1} parent=1 // loop_footer_branch
      %16 = sbr.rel target = $region3
    $region8: #{tpu_custom_call.1} parent=1 // loop_exit
      _
    %1909 = vsyncpa [#allocation3], 1
    %s1910 = scalar_lea.sflag [#allocation3], 1
    %1911 = vsyncpa %s1910, 1
    %1912 = vsyncpa [#allocation6], 1
    %1913 = vsyncpa [#allocation4], 1
    %s1914 = scalar_lea.sflag [#allocation4], 1
    %1915 = vsyncpa %s1914, 1

</llo_original>
